<compile_context>
chip_gen: v7x
topology: tpu7x:2x2x1
jax: 0.10.0
libtpu: 0.0.40
codegen_flags: <defaults>
</compile_context>

<pallas_src>
import functools

import jax
import jax.numpy as jnp
import numpy as np
from jax import lax
from jax.experimental import pallas as pl
from jax.experimental.pallas import tpu as pltpu

# ---- problem sizes (small, consistent with the module) ----------------------
B = 2           # batch
C_IN = 4        # input channels
H = W = 16      # spatial
F_DIM = 32      # backbone.fc.in_features  (conv output channels)
O_DIM = 8       # backbone.fc.out_features (per-domain classifier output)
N_DOMAIN = 3    # num_domain
K_TAPS = 9      # 3x3 conv taps

HW = H * W                      # 256 positions per image
ROWS = B * HW                   # 512 im2col rows
PATCH_COLS = 40                 # 36 tap-cols + 1 ones-col (bias) + 3 zero pad
HEAD_W0 = PATCH_COLS            # row offset of head weights in packed params
HEAD_B = HEAD_W0 + F_DIM        # row offset of head bias  (72)
PARAM_ROWS = 80                 # packed parameter slab rows (multiple of 8)

_VMEM = pl.BlockSpec(memory_space=pltpu.MemorySpace.VMEM)


# ---- fused kernel: conv (+bias) -> ReLU -> GAP (MXU) -> head(s) -------------
def fused_kernel(patches_ref, params_ref, out_ref, *, n_out):
    # patches_ref: (ROWS, PATCH_COLS)  im2col patches, col 36 == 1.0 (bias), 37..39 == 0
    # params_ref : (PARAM_ROWS, F)     rows 0..36 conv W + bias, 40..71 head W, 72 head b
    # out_ref    : (B, n_out)          n_out = D*O (training) or O (eval, pre-averaged head)

    # Conv + bias in one MXU matmul (bias folded via the ones column).
    conv = jnp.dot(patches_ref[...], params_ref[0:PATCH_COLS, :],
                   preferred_element_type=jnp.float32)            # (ROWS, F)
    act = jnp.maximum(conv, 0.0)                                  # ReLU

    # Global average pool on the MXU: (B, ROWS) averaging matrix from iota
    # (avoids the 256-deep cross-sublane reduce and any 3-D reshape).
    r = lax.broadcasted_iota(jnp.int32, (B, ROWS), 1)
    bidx = lax.broadcasted_iota(jnp.int32, (B, ROWS), 0)
    in_img = (r >= bidx * HW) & (r < (bidx + 1) * HW)
    avg = jnp.where(in_img, jnp.float32(1.0 / HW), jnp.float32(0.0))
    feat = jnp.dot(avg, act, preferred_element_type=jnp.float32)  # (B, F)

    # Domain heads (training: all D heads concatenated; eval: pre-averaged head).
    logits = jnp.dot(feat, params_ref[HEAD_W0:HEAD_W0 + F_DIM, 0:n_out],
                     preferred_element_type=jnp.float32)
    logits = logits + params_ref[HEAD_B:HEAD_B + 1, 0:n_out]
    out_ref[...] = logits.astype(out_ref.dtype)


# ---- init-time parameter packing (runs ONCE, outside the jitted forward) ----
def pack_params(params):
    # Conv: OIHW -> (kh, kw, Cin, F) -> (36, F); row order matches im2col cols.
    cw = jnp.transpose(params["conv_w"], (2, 3, 1, 0)).reshape(
        K_TAPS * C_IN, F_DIM).astype(jnp.float32)
    cb = params["conv_b"].astype(jnp.float32)                     # (F,)
    # Training head: PyTorch Linear (D, O, F): y_d = x @ W_d.T + b_d, stacked on dim=1.
    hw_t = jnp.transpose(params["cls_w"], (2, 0, 1)).reshape(
        F_DIM, N_DOMAIN * O_DIM).astype(jnp.float32)              # (F, D*O)
    hb_t = params["cls_b"].reshape(N_DOMAIN * O_DIM).astype(jnp.float32)
    # Eval head: mean over domains is linear -> pre-average weights/bias.
    hw_e = jnp.mean(params["cls_w"], axis=0).T.astype(jnp.float32)   # (F, O)
    hb_e = jnp.mean(params["cls_b"], axis=0).astype(jnp.float32)     # (O,)

    def assemble(hw, hb):
        n = hw.shape[1]
        p = jnp.zeros((PARAM_ROWS, F_DIM), jnp.float32)
        p = p.at[0:K_TAPS * C_IN, :].set(cw)
        p = p.at[K_TAPS * C_IN, :].set(cb)          # conv bias row (row 36)
        p = p.at[HEAD_W0:HEAD_W0 + F_DIM, 0:n].set(hw)
        p = p.at[HEAD_B, 0:n].set(hb)
        return p

    return {"train": assemble(hw_t, hb_t), "eval": assemble(hw_e, hb_e)}


# ---- im2col + ones-column (candidate for input fusion into the kernel) ------
def _build_patches(x_nchw):
    x = jnp.transpose(x_nchw, (0, 2, 3, 1))                       # (B,H,W,Cin)
    xp = jnp.pad(x, ((0, 0), (1, 1), (1, 1), (0, 0)))
    taps = [xp[:, ki:ki + H, kj:kj + W, :]
            for ki in range(3) for kj in range(3)]
    patches = jnp.concatenate(taps, axis=-1).reshape(ROWS, K_TAPS * C_IN)
    ones = jnp.ones((ROWS, 1), jnp.float32)                       # bias column
    pad = jnp.zeros((ROWS, PATCH_COLS - K_TAPS * C_IN - 1), jnp.float32)
    return jnp.concatenate([patches, ones, pad], axis=-1)         # (ROWS, 40)


# ---- forward -----------------------------------------------------------------
@functools.partial(jax.jit, static_argnames=("training",))
def domain_independent_classifier(x_nchw, packed, training=False):
    patches = _build_patches(x_nchw)
    n_out = N_DOMAIN * O_DIM if training else O_DIM
    params = packed["train"] if training else packed["eval"]

    cost = pl.CostEstimate(
        flops=2 * ROWS * PATCH_COLS * F_DIM      # conv matmul
              + 2 * B * ROWS * F_DIM             # GAP matmul
              + 2 * B * F_DIM * n_out,           # head matmul
        transcendentals=0,
        bytes_accessed=4 * (ROWS * PATCH_COLS + PARAM_ROWS * F_DIM + B * n_out),
    )
    out = pl.pallas_call(
        functools.partial(fused_kernel, n_out=n_out),
        out_shape=jax.ShapeDtypeStruct((B, n_out), jnp.float32),
        in_specs=[_VMEM, _VMEM],
        out_specs=_VMEM,
        compiler_params=pltpu.CompilerParams(
            # Let XLA fuse the im2col producer into the custom-call input
            # instead of a separate fusion dispatch + HBM round-trip.
            allow_input_fusion=[True, False],
        ),
        cost_estimate=cost,
    )(patches, params)

    if training:
        return out.reshape(B, N_DOMAIN, O_DIM)    # torch.stack(..., dim=1)
    return out                                    # mean over domains


# ---- pure-JAX reference for correctness check --------------------------------
def reference(x_nchw, params, training=False):
    hp = jax.lax.Precision.HIGHEST
    x = jnp.transpose(x_nchw, (0, 2, 3, 1))
    xp = jnp.pad(x, ((0, 0), (1, 1), (1, 1), (0, 0)))
    w9 = jnp.transpose(params["conv_w"], (2, 3, 1, 0)).reshape(9, C_IN, F_DIM)
    acc = jnp.zeros((B, H, W, F_DIM), jnp.float32)
    for ki in range(3):
        for kj in range(3):
            acc += jnp.einsum("bhwc,cf->bhwf",
                              xp[:, ki:ki + H, kj:kj + W, :], w9[ki * 3 + kj],
                              precision=hp)
    feat = jnp.mean(jax.nn.relu(acc + params["conv_b"]), axis=(1, 2))
    logits = jnp.einsum("bf,dof->bdo", feat, params["cls_w"],
                        precision=hp) + params["cls_b"]
    return logits if training else jnp.mean(logits, axis=1)


if __name__ == "__main__":
    key = jax.random.PRNGKey(0)
    k = jax.random.split(key, 6)
    x = jax.random.normal(k[0], (B, C_IN, H, W), jnp.float32)
    params = {
        "conv_w": jax.random.normal(k[1], (F_DIM, C_IN, 3, 3), jnp.float32) * 0.1,
        "conv_b": jax.random.normal(k[2], (F_DIM,), jnp.float32) * 0.1,
        "cls_w": jax.random.normal(k[3], (N_DOMAIN, O_DIM, F_DIM), jnp.float32) * 0.1,
        "cls_b": jax.random.normal(k[4], (N_DOMAIN, O_DIM), jnp.float32) * 0.1,
    }

    # Pre-pack parameters once ("init time"), outside the per-call jit path.
    packed = pack_params(params)

    out_eval = jax.block_until_ready(
        domain_independent_classifier(x, packed, training=False))
    out_train = jax.block_until_ready(
        domain_independent_classifier(x, packed, training=True))

    ref_eval = reference(x, params, training=False)
    ref_train = reference(x, params, training=True)
    np.testing.assert_allclose(np.asarray(out_eval), np.asarray(ref_eval),
                               rtol=1e-5, atol=1e-5)
    np.testing.assert_allclose(np.asarray(out_train), np.asarray(ref_train),
                               rtol=1e-5, atol=1e-5)
    assert out_train.shape == (B, N_DOMAIN, O_DIM)
    assert out_eval.shape == (B, O_DIM)
    print("KERNEL_OK")
</pallas_src>

<mosaic_0001>
module attributes {stable_mosaic.version = 11 : i64} {
  func.func @fused_kernel(%arg0: memref<512x40xf32, #tpu.memory_space<vmem>>, %arg1: memref<80x32xf32, #tpu.memory_space<vmem>>, %arg2: memref<2x8xf32, #tpu.memory_space<vmem>>) attributes {dimension_semantics = [], scalar_prefetch = 0 : i64, scratch_operands = 0 : i64, tpu.core_type = #tpu.core_type<tc>} {
    %c0 = arith.constant 0 : index
    %c0_0 = arith.constant 0 : index
    %0 = vector.load %arg0[%c0, %c0_0] : memref<512x40xf32, #tpu.memory_space<vmem>>, vector<512x40xf32>
    %c0_1 = arith.constant 0 : index
    %c0_2 = arith.constant 0 : index
    %1 = vector.load %arg1[%c0_1, %c0_2] : memref<80x32xf32, #tpu.memory_space<vmem>>, vector<40x32xf32>
    %cst = arith.constant dense<0.000000e+00> : vector<512x32xf32>
    %2 = tpu.matmul %0, %1, %cst {dimension_numbers = #tpu.dot_dimension_numbers<[1], [0], [0], [1], [0, 0, 1, 1], [], []>} : vector<512x40xf32>, vector<40x32xf32>, vector<512x32xf32> -> vector<512x32xf32>
    %cst_3 = arith.constant 0.000000e+00 : f32
    %3 = vector.broadcast %cst_3 : f32 to vector<512x32xf32>
    %4 = arith.maximumf %2, %3 : vector<512x32xf32>
    %5 = tpu.iota {dimensions = array<i32: 1>} : vector<2x512xi32>
    %6 = tpu.iota {dimensions = array<i32: 0>} : vector<2x512xi32>
    %c256_i32 = arith.constant 256 : i32
    %7 = vector.broadcast %c256_i32 : i32 to vector<2x512xi32>
    %8 = arith.muli %6, %7 : vector<2x512xi32>
    %9 = arith.cmpi sge, %5, %8 : vector<2x512xi32>
    %c1_i32 = arith.constant 1 : i32
    %10 = vector.broadcast %c1_i32 : i32 to vector<2x512xi32>
    %11 = arith.addi %6, %10 : vector<2x512xi32>
    %c256_i32_4 = arith.constant 256 : i32
    %12 = vector.broadcast %c256_i32_4 : i32 to vector<2x512xi32>
    %13 = arith.muli %11, %12 : vector<2x512xi32>
    %14 = arith.cmpi slt, %5, %13 : vector<2x512xi32>
    %15 = arith.andi %9, %14 : vector<2x512xi1>
    %cst_5 = arith.constant 3.906250e-03 : f32
    %cst_6 = arith.constant 0.000000e+00 : f32
    %16 = vector.broadcast %cst_5 : f32 to vector<2x512xf32>
    %17 = vector.broadcast %cst_6 : f32 to vector<2x512xf32>
    %18 = arith.select %15, %16, %17 : vector<2x512xi1>, vector<2x512xf32>
    %cst_7 = arith.constant dense<0.000000e+00> : vector<2x32xf32>
    %19 = tpu.matmul %18, %4, %cst_7 {dimension_numbers = #tpu.dot_dimension_numbers<[1], [0], [0], [1], [0, 0, 1, 1], [], []>} : vector<2x512xf32>, vector<512x32xf32>, vector<2x32xf32> -> vector<2x32xf32>
    %c40 = arith.constant 40 : index
    %c0_8 = arith.constant 0 : index
    %20 = vector.load %arg1[%c40, %c0_8] : memref<80x32xf32, #tpu.memory_space<vmem>>, vector<32x8xf32>
    %cst_9 = arith.constant dense<0.000000e+00> : vector<2x8xf32>
    %21 = tpu.matmul %19, %20, %cst_9 {dimension_numbers = #tpu.dot_dimension_numbers<[1], [0], [0], [1], [0, 0, 1, 1], [], []>} : vector<2x32xf32>, vector<32x8xf32>, vector<2x8xf32> -> vector<2x8xf32>
    %c72 = arith.constant 72 : index
    %c0_10 = arith.constant 0 : index
    %22 = vector.load %arg1[%c72, %c0_10] : memref<80x32xf32, #tpu.memory_space<vmem>>, vector<1x8xf32>
    %23 = vector.broadcast %22 : vector<1x8xf32> to vector<2x8xf32>
    %24 = arith.addf %21, %23 : vector<2x8xf32>
    %c0_11 = arith.constant 0 : index
    %c0_12 = arith.constant 0 : index
    %25 = vector.load %arg2[%c0_11, %c0_12] : memref<2x8xf32, #tpu.memory_space<vmem>>, vector<2x8xf32>
    tpu.vector_store %arg2[%c0_11, %c0_12], %24 {strides = array<i32>} : memref<2x8xf32, #tpu.memory_space<vmem>>, vector<2x8xf32>,
    return
  }
}

</mosaic_0001>

<llo_original>
// kernel: domain_independent_classifier.2
$region0: #{domain_independent_classifier.2}
  #allocation0 [shape = 'u32[]', space=smem, size = 0x4, offset = 0x4, fixed_abs, tag = 'smem constant byte address 0x4 - core index']
  #allocation1 [shape = 'u32[144,128]{1,0:T(1,128)}', space=vmem, size = 0x12000, scoped, tag = 'internal scratch']
  #allocation2 [shape = 'u32[2048]{0}', space=vmem, size = 0x2000, scoped, tag = 'scoped memory for domain_independent_classifier.2']
  #allocation3 [shape = 'u32[2048]{0}', space=vmem, size = 0x2000, scoped, tag = 'scoped memory for domain_independent_classifier.2']
  #allocation4 [shape = 'u32[2048]{0}', space=vmem, size = 0x2000, scoped, tag = 'scoped memory for domain_independent_classifier.2']
  #allocation5 [shape = 'u32[2048]{0}', space=vmem, size = 0x2000, scoped, tag = 'scoped memory for domain_independent_classifier.2']
  #allocation6 [shape = 'u32[2048]{0}', space=vmem, size = 0x2000, scoped, tag = 'scoped memory for domain_independent_classifier.2']
  %s0 = inlined_call_operand.vmem [shape: f32[80,32], index: 0, kind: input, shape index: {}]
  %s1 = inlined_call_operand.vmem [shape: f32[512,36], index: 1, kind: input, shape index: {}]
  %s2 = inlined_call_operand.<no memory space> [shape: f32[], index: 2, kind: input, shape index: {}]
  %s3 = inlined_call_operand.vmem [shape: f32[40], index: 3, kind: input, shape index: {}]
  %s4 = inlined_call_operand.vmem [shape: f32[40], index: 4, kind: input, shape index: {}]
  %s5 = inlined_call_operand.hbm [shape: f32[2,8], index: 5, kind: output, shape index: {}]
  %s6 = sld [smem:[#allocation0]]
  $region26: #{domain_independent_classifier.2} parent=0
    _
  %s8 = ssub.s32 1, %s6
  %s9 = scalar_select 0, %s8, %s6
  %v10 = vstv %s2
  $region1: #{domain_independent_classifier.2} parent=0
    #allocation7 [shape = 'u8[1024]{0}', space=vmem, size = 0x400, scoped, tag = 'output window, operand 0, single buffered']
    #allocation8 [shape = 's32[1]{0}', space=sflag, size = 0x4, scoped, tag = 'scoped memory for domain_independent_classifier.2']
    #allocation9 [shape = 'u8[262144]{0}', space=vmem, size = 0x40000, dematerialized = true, scoped, tag = 'FusionAdapter Buffer %fusion.1 = f32[512,40]{1,0:T(8,128)} fusion(%param_1.20, %param_2.7, %param_3.5, %param_4.2), kind=kLoop, calls=%fused_computation.9.clone, metadata={op_name="jit(domain_independent_classifier)/concatenate" stack_frame_id=15}']
    %11 = vsyncpa [#allocation8], 0
    // Predicated region
    $region2: #{domain_independent_classifier.2} parent=1 // pred_check
      _
    $region3: #{domain_independent_classifier.2} parent=1 // pred_check_branch
      %13 = sbr.rel (0) target = $region5
    $region4: #{domain_independent_classifier.2} parent=1 // pred_region
      _
    $region5: #{domain_independent_classifier.2} parent=1 // pred_fallthru
      _
    // Predicated region
    $region6: #{domain_independent_classifier.2} parent=1 // pred_check
      _
    $region7: #{domain_independent_classifier.2} parent=1 // pred_check_branch
      %15 = sbr.rel (0) target = $region9
    $region8: #{domain_independent_classifier.2} parent=1 // pred_region
      _
    $region9: #{domain_independent_classifier.2} parent=1 // pred_fallthru
      _
    // Predicated region
    $region10: #{domain_independent_classifier.2} parent=1 // pred_check
      _
    $region11: #{domain_independent_classifier.2} parent=1 // pred_check_branch
      %17 = sbr.rel (0) target = $region13
    $region12: #{domain_independent_classifier.2} parent=1 // pred_region
      _
    $region13: #{domain_independent_classifier.2} parent=1 // pred_fallthru
      _
    // Predicated region
    $region14: #{domain_independent_classifier.2} parent=1 // pred_check
      _
    $region15: #{domain_independent_classifier.2} parent=1 // pred_check_branch
      %19 = sbr.rel (0) target = $region17
    $region16: #{domain_independent_classifier.2} parent=1 // pred_region
      _
    $region17: #{domain_independent_classifier.2} parent=1 // pred_fallthru
      _
    %v20 = vld [vmem:[%s1] sm:$0xff]
    %v21 = vlaneseq
    %v22 = vand.u32 %v21, 127
    %vm24 = vcmp.lt.s32.totalorder %v22, 36
    %v25 = vsel %vm24, %v20, %v10
    %v26 = vld [vmem:[%s3] ss:$0 sm:$0xff]
    %v27 = vld [vmem:[%s4] ss:$0 sm:$0xff]
    %28 = xla_tuple %v25, %v27
    %29 = xla_tuple %28
    %v30 = vmax.f32 %v25, %v27
    %31 = xla_tuple %v30
    %32 = xla_tuple %v30, %v26
    %33 = xla_tuple %32
    %v34 = vmax.f32 %v30, %v26
    %35 = xla_tuple %v34
    %37 = vst [vmem:[#allocation9] sm:$0xff] %v34
    %s38 = scalar_lea.vmem %s1, 8
    %v39 = vld [vmem:[%s38] sm:$0xff]
    %v40 = vlaneseq
    %v41 = vand.u32 %v40, 127
    %vm43 = vcmp.lt.s32.totalorder %v41, 36
    %v44 = vsel %vm43, %v39, %v10
    %45 = xla_tuple %v44, %v27
    %46 = xla_tuple %45
    %v47 = vmax.f32 %v44, %v27
    %48 = xla_tuple %v47
    %49 = xla_tuple %v47, %v26
    %50 = xla_tuple %49
    %v51 = vmax.f32 %v47, %v26
    %52 = xla_tuple %v51
    %s53 = scalar_lea.vmem [#allocation9], 8
    %55 = vst [vmem:[%s53] sm:$0xff] %v51
    %s56 = scalar_lea.vmem %s1, 16
    %v57 = vld [vmem:[%s56] sm:$0xff]
    %v58 = vlaneseq
    %v59 = vand.u32 %v58, 127
    %vm61 = vcmp.lt.s32.totalorder %v59, 36
    %v62 = vsel %vm61, %v57, %v10
    %63 = xla_tuple %v62, %v27
    %64 = xla_tuple %63
    %v65 = vmax.f32 %v62, %v27
    %66 = xla_tuple %v65
    %67 = xla_tuple %v65, %v26
    %68 = xla_tuple %67
    %v69 = vmax.f32 %v65, %v26
    %70 = xla_tuple %v69
    %s71 = scalar_lea.vmem [#allocation9], 16
    %73 = vst [vmem:[%s71] sm:$0xff] %v69
    %s74 = scalar_lea.vmem %s1, 24
    %v75 = vld [vmem:[%s74] sm:$0xff]
    %v76 = vlaneseq
    %v77 = vand.u32 %v76, 127
    %vm79 = vcmp.lt.s32.totalorder %v77, 36
    %v80 = vsel %vm79, %v75, %v10
    %81 = xla_tuple %v80, %v27
    %82 = xla_tuple %81
    %v83 = vmax.f32 %v80, %v27
    %84 = xla_tuple %v83
    %85 = xla_tuple %v83, %v26
    %86 = xla_tuple %85
    %v87 = vmax.f32 %v83, %v26
    %88 = xla_tuple %v87
    %s89 = scalar_lea.vmem [#allocation9], 24
    %91 = vst [vmem:[%s89] sm:$0xff] %v87
    %s92 = scalar_lea.vmem %s1, 32
    %v93 = vld [vmem:[%s92] sm:$0xff]
    %v94 = vlaneseq
    %v95 = vand.u32 %v94, 127
    %vm97 = vcmp.lt.s32.totalorder %v95, 36
    %v98 = vsel %vm97, %v93, %v10
    %99 = xla_tuple %v98, %v27
    %100 = xla_tuple %99
    %v101 = vmax.f32 %v98, %v27
    %102 = xla_tuple %v101
    %103 = xla_tuple %v101, %v26
    %104 = xla_tuple %103
    %v105 = vmax.f32 %v101, %v26
    %106 = xla_tuple %v105
    %s107 = scalar_lea.vmem [#allocation9], 32
    %109 = vst [vmem:[%s107] sm:$0xff] %v105
    %s110 = scalar_lea.vmem %s1, 40
    %v111 = vld [vmem:[%s110] sm:$0xff]
    %v112 = vlaneseq
    %v113 = vand.u32 %v112, 127
    %vm115 = vcmp.lt.s32.totalorder %v113, 36
    %v116 = vsel %vm115, %v111, %v10
    %117 = xla_tuple %v116, %v27
    %118 = xla_tuple %117
    %v119 = vmax.f32 %v116, %v27
    %120 = xla_tuple %v119
    %121 = xla_tuple %v119, %v26
    %122 = xla_tuple %121
    %v123 = vmax.f32 %v119, %v26
    %124 = xla_tuple %v123
    %s125 = scalar_lea.vmem [#allocation9], 40
    %127 = vst [vmem:[%s125] sm:$0xff] %v123
    %s128 = scalar_lea.vmem %s1, 48
    %v129 = vld [vmem:[%s128] sm:$0xff]
    %v130 = vlaneseq
    %v131 = vand.u32 %v130, 127
    %vm133 = vcmp.lt.s32.totalorder %v131, 36
    %v134 = vsel %vm133, %v129, %v10
    %135 = xla_tuple %v134, %v27
    %136 = xla_tuple %135
    %v137 = vmax.f32 %v134, %v27
    %138 = xla_tuple %v137
    %139 = xla_tuple %v137, %v26
    %140 = xla_tuple %139
    %v141 = vmax.f32 %v137, %v26
    %142 = xla_tuple %v141
    %s143 = scalar_lea.vmem [#allocation9], 48
    %145 = vst [vmem:[%s143] sm:$0xff] %v141
    %s146 = scalar_lea.vmem %s1, 56
    %v147 = vld [vmem:[%s146] sm:$0xff]
    %v148 = vlaneseq
    %v149 = vand.u32 %v148, 127
    %vm151 = vcmp.lt.s32.totalorder %v149, 36
    %v152 = vsel %vm151, %v147, %v10
    %153 = xla_tuple %v152, %v27
    %154 = xla_tuple %153
    %v155 = vmax.f32 %v152, %v27
    %156 = xla_tuple %v155
    %157 = xla_tuple %v155, %v26
    %158 = xla_tuple %157
    %v159 = vmax.f32 %v155, %v26
    %160 = xla_tuple %v159
    %s161 = scalar_lea.vmem [#allocation9], 56
    %163 = vst [vmem:[%s161] sm:$0xff] %v159
    %s164 = scalar_lea.vmem %s1, 64
    %v165 = vld [vmem:[%s164] sm:$0xff]
    %v166 = vlaneseq
    %v167 = vand.u32 %v166, 127
    %vm169 = vcmp.lt.s32.totalorder %v167, 36
    %v170 = vsel %vm169, %v165, %v10
    %171 = xla_tuple %v170, %v27
    %172 = xla_tuple %171
    %v173 = vmax.f32 %v170, %v27
    %174 = xla_tuple %v173
    %175 = xla_tuple %v173, %v26
    %176 = xla_tuple %175
    %v177 = vmax.f32 %v173, %v26
    %178 = xla_tuple %v177
    %s179 = scalar_lea.vmem [#allocation9], 64
    %181 = vst [vmem:[%s179] sm:$0xff] %v177
    %s182 = scalar_lea.vmem %s1, 72
    %v183 = vld [vmem:[%s182] sm:$0xff]
    %v184 = vlaneseq
    %v185 = vand.u32 %v184, 127
    %vm187 = vcmp.lt.s32.totalorder %v185, 36
    %v188 = vsel %vm187, %v183, %v10
    %189 = xla_tuple %v188, %v27
    %190 = xla_tuple %189
    %v191 = vmax.f32 %v188, %v27
    %192 = xla_tuple %v191
    %193 = xla_tuple %v191, %v26
    %194 = xla_tuple %193
    %v195 = vmax.f32 %v191, %v26
    %196 = xla_tuple %v195
    %s197 = scalar_lea.vmem [#allocation9], 72
    %199 = vst [vmem:[%s197] sm:$0xff] %v195
    %s200 = scalar_lea.vmem %s1, 80
    %v201 = vld [vmem:[%s200] sm:$0xff]
    %v202 = vlaneseq
    %v203 = vand.u32 %v202, 127
    %vm205 = vcmp.lt.s32.totalorder %v203, 36
    %v206 = vsel %vm205, %v201, %v10
    %207 = xla_tuple %v206, %v27
    %208 = xla_tuple %207
    %v209 = vmax.f32 %v206, %v27
    %210 = xla_tuple %v209
    %211 = xla_tuple %v209, %v26
    %212 = xla_tuple %211
    %v213 = vmax.f32 %v209, %v26
    %214 = xla_tuple %v213
    %s215 = scalar_lea.vmem [#allocation9], 80
    %217 = vst [vmem:[%s215] sm:$0xff] %v213
    %s218 = scalar_lea.vmem %s1, 88
    %v219 = vld [vmem:[%s218] sm:$0xff]
    %v220 = vlaneseq
    %v221 = vand.u32 %v220, 127
    %vm223 = vcmp.lt.s32.totalorder %v221, 36
    %v224 = vsel %vm223, %v219, %v10
    %225 = xla_tuple %v224, %v27
    %226 = xla_tuple %225
    %v227 = vmax.f32 %v224, %v27
    %228 = xla_tuple %v227
    %229 = xla_tuple %v227, %v26
    %230 = xla_tuple %229
    %v231 = vmax.f32 %v227, %v26
    %232 = xla_tuple %v231
    %s233 = scalar_lea.vmem [#allocation9], 88
    %235 = vst [vmem:[%s233] sm:$0xff] %v231
    %s236 = scalar_lea.vmem %s1, 96
    %v237 = vld [vmem:[%s236] sm:$0xff]
    %v238 = vlaneseq
    %v239 = vand.u32 %v238, 127
    %vm241 = vcmp.lt.s32.totalorder %v239, 36
    %v242 = vsel %vm241, %v237, %v10
    %243 = xla_tuple %v242, %v27
    %244 = xla_tuple %243
    %v245 = vmax.f32 %v242, %v27
    %246 = xla_tuple %v245
    %247 = xla_tuple %v245, %v26
    %248 = xla_tuple %247
    %v249 = vmax.f32 %v245, %v26
    %250 = xla_tuple %v249
    %s251 = scalar_lea.vmem [#allocation9], 96
    %253 = vst [vmem:[%s251] sm:$0xff] %v249
    %s254 = scalar_lea.vmem %s1, 104
    %v255 = vld [vmem:[%s254] sm:$0xff]
    %v256 = vlaneseq
    %v257 = vand.u32 %v256, 127
    %vm259 = vcmp.lt.s32.totalorder %v257, 36
    %v260 = vsel %vm259, %v255, %v10
    %261 = xla_tuple %v260, %v27
    %262 = xla_tuple %261
    %v263 = vmax.f32 %v260, %v27
    %264 = xla_tuple %v263
    %265 = xla_tuple %v263, %v26
    %266 = xla_tuple %265
    %v267 = vmax.f32 %v263, %v26
    %268 = xla_tuple %v267
    %s269 = scalar_lea.vmem [#allocation9], 104
    %271 = vst [vmem:[%s269] sm:$0xff] %v267
    %s272 = scalar_lea.vmem %s1, 112
    %v273 = vld [vmem:[%s272] sm:$0xff]
    %v274 = vlaneseq
    %v275 = vand.u32 %v274, 127
    %vm277 = vcmp.lt.s32.totalorder %v275, 36
    %v278 = vsel %vm277, %v273, %v10
    %279 = xla_tuple %v278, %v27
    %280 = xla_tuple %279
    %v281 = vmax.f32 %v278, %v27
    %282 = xla_tuple %v281
    %283 = xla_tuple %v281, %v26
    %284 = xla_tuple %283
    %v285 = vmax.f32 %v281, %v26
    %286 = xla_tuple %v285
    %s287 = scalar_lea.vmem [#allocation9], 112
    %289 = vst [vmem:[%s287] sm:$0xff] %v285
    %s290 = scalar_lea.vmem %s1, 120
    %v291 = vld [vmem:[%s290] sm:$0xff]
    %v292 = vlaneseq
    %v293 = vand.u32 %v292, 127
    %vm295 = vcmp.lt.s32.totalorder %v293, 36
    %v296 = vsel %vm295, %v291, %v10
    %297 = xla_tuple %v296, %v27
    %298 = xla_tuple %297
    %v299 = vmax.f32 %v296, %v27
    %300 = xla_tuple %v299
    %301 = xla_tuple %v299, %v26
    %302 = xla_tuple %301
    %v303 = vmax.f32 %v299, %v26
    %304 = xla_tuple %v303
    %s305 = scalar_lea.vmem [#allocation9], 120
    %307 = vst [vmem:[%s305] sm:$0xff] %v303
    %s308 = scalar_lea.vmem %s1, 128
    %v309 = vld [vmem:[%s308] sm:$0xff]
    %v310 = vlaneseq
    %v311 = vand.u32 %v310, 127
    %vm313 = vcmp.lt.s32.totalorder %v311, 36
    %v314 = vsel %vm313, %v309, %v10
    %315 = xla_tuple %v314, %v27
    %316 = xla_tuple %315
    %v317 = vmax.f32 %v314, %v27
    %318 = xla_tuple %v317
    %319 = xla_tuple %v317, %v26
    %320 = xla_tuple %319
    %v321 = vmax.f32 %v317, %v26
    %322 = xla_tuple %v321
    %s323 = scalar_lea.vmem [#allocation9], 128
    %325 = vst [vmem:[%s323] sm:$0xff] %v321
    %s326 = scalar_lea.vmem %s1, 136
    %v327 = vld [vmem:[%s326] sm:$0xff]
    %v328 = vlaneseq
    %v329 = vand.u32 %v328, 127
    %vm331 = vcmp.lt.s32.totalorder %v329, 36
    %v332 = vsel %vm331, %v327, %v10
    %333 = xla_tuple %v332, %v27
    %334 = xla_tuple %333
    %v335 = vmax.f32 %v332, %v27
    %336 = xla_tuple %v335
    %337 = xla_tuple %v335, %v26
    %338 = xla_tuple %337
    %v339 = vmax.f32 %v335, %v26
    %340 = xla_tuple %v339
    %s341 = scalar_lea.vmem [#allocation9], 136
    %343 = vst [vmem:[%s341] sm:$0xff] %v339
    %s344 = scalar_lea.vmem %s1, 144
    %v345 = vld [vmem:[%s344] sm:$0xff]
    %v346 = vlaneseq
    %v347 = vand.u32 %v346, 127
    %vm349 = vcmp.lt.s32.totalorder %v347, 36
    %v350 = vsel %vm349, %v345, %v10
    %351 = xla_tuple %v350, %v27
    %352 = xla_tuple %351
    %v353 = vmax.f32 %v350, %v27
    %354 = xla_tuple %v353
    %355 = xla_tuple %v353, %v26
    %356 = xla_tuple %355
    %v357 = vmax.f32 %v353, %v26
    %358 = xla_tuple %v357
    %s359 = scalar_lea.vmem [#allocation9], 144
    %361 = vst [vmem:[%s359] sm:$0xff] %v357
    %s362 = scalar_lea.vmem %s1, 152
    %v363 = vld [vmem:[%s362] sm:$0xff]
    %v364 = vlaneseq
    %v365 = vand.u32 %v364, 127
    %vm367 = vcmp.lt.s32.totalorder %v365, 36
    %v368 = vsel %vm367, %v363, %v10
    %369 = xla_tuple %v368, %v27
    %370 = xla_tuple %369
    %v371 = vmax.f32 %v368, %v27
    %372 = xla_tuple %v371
    %373 = xla_tuple %v371, %v26
    %374 = xla_tuple %373
    %v375 = vmax.f32 %v371, %v26
    %376 = xla_tuple %v375
    %s377 = scalar_lea.vmem [#allocation9], 152
    %379 = vst [vmem:[%s377] sm:$0xff] %v375
    %s380 = scalar_lea.vmem %s1, 160
    %v381 = vld [vmem:[%s380] sm:$0xff]
    %v382 = vlaneseq
    %v383 = vand.u32 %v382, 127
    %vm385 = vcmp.lt.s32.totalorder %v383, 36
    %v386 = vsel %vm385, %v381, %v10
    %387 = xla_tuple %v386, %v27
    %388 = xla_tuple %387
    %v389 = vmax.f32 %v386, %v27
    %390 = xla_tuple %v389
    %391 = xla_tuple %v389, %v26
    %392 = xla_tuple %391
    %v393 = vmax.f32 %v389, %v26
    %394 = xla_tuple %v393
    %s395 = scalar_lea.vmem [#allocation9], 160
    %397 = vst [vmem:[%s395] sm:$0xff] %v393
    %s398 = scalar_lea.vmem %s1, 168
    %v399 = vld [vmem:[%s398] sm:$0xff]
    %v400 = vlaneseq
    %v401 = vand.u32 %v400, 127
    %vm403 = vcmp.lt.s32.totalorder %v401, 36
    %v404 = vsel %vm403, %v399, %v10
    %405 = xla_tuple %v404, %v27
    %406 = xla_tuple %405
    %v407 = vmax.f32 %v404, %v27
    %408 = xla_tuple %v407
    %409 = xla_tuple %v407, %v26
    %410 = xla_tuple %409
    %v411 = vmax.f32 %v407, %v26
    %412 = xla_tuple %v411
    %s413 = scalar_lea.vmem [#allocation9], 168
    %415 = vst [vmem:[%s413] sm:$0xff] %v411
    %s416 = scalar_lea.vmem %s1, 176
    %v417 = vld [vmem:[%s416] sm:$0xff]
    %v418 = vlaneseq
    %v419 = vand.u32 %v418, 127
    %vm421 = vcmp.lt.s32.totalorder %v419, 36
    %v422 = vsel %vm421, %v417, %v10
    %423 = xla_tuple %v422, %v27
    %424 = xla_tuple %423
    %v425 = vmax.f32 %v422, %v27
    %426 = xla_tuple %v425
    %427 = xla_tuple %v425, %v26
    %428 = xla_tuple %427
    %v429 = vmax.f32 %v425, %v26
    %430 = xla_tuple %v429
    %s431 = scalar_lea.vmem [#allocation9], 176
    %433 = vst [vmem:[%s431] sm:$0xff] %v429
    %s434 = scalar_lea.vmem %s1, 184
    %v435 = vld [vmem:[%s434] sm:$0xff]
    %v436 = vlaneseq
    %v437 = vand.u32 %v436, 127
    %vm439 = vcmp.lt.s32.totalorder %v437, 36
    %v440 = vsel %vm439, %v435, %v10
    %441 = xla_tuple %v440, %v27
    %442 = xla_tuple %441
    %v443 = vmax.f32 %v440, %v27
    %444 = xla_tuple %v443
    %445 = xla_tuple %v443, %v26
    %446 = xla_tuple %445
    %v447 = vmax.f32 %v443, %v26
    %448 = xla_tuple %v447
    %s449 = scalar_lea.vmem [#allocation9], 184
    %451 = vst [vmem:[%s449] sm:$0xff] %v447
    %s452 = scalar_lea.vmem %s1, 192
    %v453 = vld [vmem:[%s452] sm:$0xff]
    %v454 = vlaneseq
    %v455 = vand.u32 %v454, 127
    %vm457 = vcmp.lt.s32.totalorder %v455, 36
    %v458 = vsel %vm457, %v453, %v10
    %459 = xla_tuple %v458, %v27
    %460 = xla_tuple %459
    %v461 = vmax.f32 %v458, %v27
    %462 = xla_tuple %v461
    %463 = xla_tuple %v461, %v26
    %464 = xla_tuple %463
    %v465 = vmax.f32 %v461, %v26
    %466 = xla_tuple %v465
    %s467 = scalar_lea.vmem [#allocation9], 192
    %469 = vst [vmem:[%s467] sm:$0xff] %v465
    %s470 = scalar_lea.vmem %s1, 200
    %v471 = vld [vmem:[%s470] sm:$0xff]
    %v472 = vlaneseq
    %v473 = vand.u32 %v472, 127
    %vm475 = vcmp.lt.s32.totalorder %v473, 36
    %v476 = vsel %vm475, %v471, %v10
    %477 = xla_tuple %v476, %v27
    %478 = xla_tuple %477
    %v479 = vmax.f32 %v476, %v27
    %480 = xla_tuple %v479
    %481 = xla_tuple %v479, %v26
    %482 = xla_tuple %481
    %v483 = vmax.f32 %v479, %v26
    %484 = xla_tuple %v483
    %s485 = scalar_lea.vmem [#allocation9], 200
    %487 = vst [vmem:[%s485] sm:$0xff] %v483
    %s488 = scalar_lea.vmem %s1, 208
    %v489 = vld [vmem:[%s488] sm:$0xff]
    %v490 = vlaneseq
    %v491 = vand.u32 %v490, 127
    %vm493 = vcmp.lt.s32.totalorder %v491, 36
    %v494 = vsel %vm493, %v489, %v10
    %495 = xla_tuple %v494, %v27
    %496 = xla_tuple %495
    %v497 = vmax.f32 %v494, %v27
    %498 = xla_tuple %v497
    %499 = xla_tuple %v497, %v26
    %500 = xla_tuple %499
    %v501 = vmax.f32 %v497, %v26
    %502 = xla_tuple %v501
    %s503 = scalar_lea.vmem [#allocation9], 208
    %505 = vst [vmem:[%s503] sm:$0xff] %v501
    %s506 = scalar_lea.vmem %s1, 216
    %v507 = vld [vmem:[%s506] sm:$0xff]
    %v508 = vlaneseq
    %v509 = vand.u32 %v508, 127
    %vm511 = vcmp.lt.s32.totalorder %v509, 36
    %v512 = vsel %vm511, %v507, %v10
    %513 = xla_tuple %v512, %v27
    %514 = xla_tuple %513
    %v515 = vmax.f32 %v512, %v27
    %516 = xla_tuple %v515
    %517 = xla_tuple %v515, %v26
    %518 = xla_tuple %517
    %v519 = vmax.f32 %v515, %v26
    %520 = xla_tuple %v519
    %s521 = scalar_lea.vmem [#allocation9], 216
    %523 = vst [vmem:[%s521] sm:$0xff] %v519
    %s524 = scalar_lea.vmem %s1, 224
    %v525 = vld [vmem:[%s524] sm:$0xff]
    %v526 = vlaneseq
    %v527 = vand.u32 %v526, 127
    %vm529 = vcmp.lt.s32.totalorder %v527, 36
    %v530 = vsel %vm529, %v525, %v10
    %531 = xla_tuple %v530, %v27
    %532 = xla_tuple %531
    %v533 = vmax.f32 %v530, %v27
    %534 = xla_tuple %v533
    %535 = xla_tuple %v533, %v26
    %536 = xla_tuple %535
    %v537 = vmax.f32 %v533, %v26
    %538 = xla_tuple %v537
    %s539 = scalar_lea.vmem [#allocation9], 224
    %541 = vst [vmem:[%s539] sm:$0xff] %v537
    %s542 = scalar_lea.vmem %s1, 232
    %v543 = vld [vmem:[%s542] sm:$0xff]
    %v544 = vlaneseq
    %v545 = vand.u32 %v544, 127
    %vm547 = vcmp.lt.s32.totalorder %v545, 36
    %v548 = vsel %vm547, %v543, %v10
    %549 = xla_tuple %v548, %v27
    %550 = xla_tuple %549
    %v551 = vmax.f32 %v548, %v27
    %552 = xla_tuple %v551
    %553 = xla_tuple %v551, %v26
    %554 = xla_tuple %553
    %v555 = vmax.f32 %v551, %v26
    %556 = xla_tuple %v555
    %s557 = scalar_lea.vmem [#allocation9], 232
    %559 = vst [vmem:[%s557] sm:$0xff] %v555
    %s560 = scalar_lea.vmem %s1, 240
    %v561 = vld [vmem:[%s560] sm:$0xff]
    %v562 = vlaneseq
    %v563 = vand.u32 %v562, 127
    %vm565 = vcmp.lt.s32.totalorder %v563, 36
    %v566 = vsel %vm565, %v561, %v10
    %567 = xla_tuple %v566, %v27
    %568 = xla_tuple %567
    %v569 = vmax.f32 %v566, %v27
    %570 = xla_tuple %v569
    %571 = xla_tuple %v569, %v26
    %572 = xla_tuple %571
    %v573 = vmax.f32 %v569, %v26
    %574 = xla_tuple %v573
    %s575 = scalar_lea.vmem [#allocation9], 240
    %577 = vst [vmem:[%s575] sm:$0xff] %v573
    %s578 = scalar_lea.vmem %s1, 248
    %v579 = vld [vmem:[%s578] sm:$0xff]
    %v580 = vlaneseq
    %v581 = vand.u32 %v580, 127
    %vm583 = vcmp.lt.s32.totalorder %v581, 36
    %v584 = vsel %vm583, %v579, %v10
    %585 = xla_tuple %v584, %v27
    %586 = xla_tuple %585
    %v587 = vmax.f32 %v584, %v27
    %588 = xla_tuple %v587
    %589 = xla_tuple %v587, %v26
    %590 = xla_tuple %589
    %v591 = vmax.f32 %v587, %v26
    %592 = xla_tuple %v591
    %s593 = scalar_lea.vmem [#allocation9], 248
    %595 = vst [vmem:[%s593] sm:$0xff] %v591
    %s596 = scalar_lea.vmem %s1, 256
    %v597 = vld [vmem:[%s596] sm:$0xff]
    %v598 = vlaneseq
    %v599 = vand.u32 %v598, 127
    %vm601 = vcmp.lt.s32.totalorder %v599, 36
    %v602 = vsel %vm601, %v597, %v10
    %603 = xla_tuple %v602, %v27
    %604 = xla_tuple %603
    %v605 = vmax.f32 %v602, %v27
    %606 = xla_tuple %v605
    %607 = xla_tuple %v605, %v26
    %608 = xla_tuple %607
    %v609 = vmax.f32 %v605, %v26
    %610 = xla_tuple %v609
    %s611 = scalar_lea.vmem [#allocation9], 256
    %613 = vst [vmem:[%s611] sm:$0xff] %v609
    %s614 = scalar_lea.vmem %s1, 264
    %v615 = vld [vmem:[%s614] sm:$0xff]
    %v616 = vlaneseq
    %v617 = vand.u32 %v616, 127
    %vm619 = vcmp.lt.s32.totalorder %v617, 36
    %v620 = vsel %vm619, %v615, %v10
    %621 = xla_tuple %v620, %v27
    %622 = xla_tuple %621
    %v623 = vmax.f32 %v620, %v27
    %624 = xla_tuple %v623
    %625 = xla_tuple %v623, %v26
    %626 = xla_tuple %625
    %v627 = vmax.f32 %v623, %v26
    %628 = xla_tuple %v627
    %s629 = scalar_lea.vmem [#allocation9], 264
    %631 = vst [vmem:[%s629] sm:$0xff] %v627
    %s632 = scalar_lea.vmem %s1, 272
    %v633 = vld [vmem:[%s632] sm:$0xff]
    %v634 = vlaneseq
    %v635 = vand.u32 %v634, 127
    %vm637 = vcmp.lt.s32.totalorder %v635, 36
    %v638 = vsel %vm637, %v633, %v10
    %639 = xla_tuple %v638, %v27
    %640 = xla_tuple %639
    %v641 = vmax.f32 %v638, %v27
    %642 = xla_tuple %v641
    %643 = xla_tuple %v641, %v26
    %644 = xla_tuple %643
    %v645 = vmax.f32 %v641, %v26
    %646 = xla_tuple %v645
    %s647 = scalar_lea.vmem [#allocation9], 272
    %649 = vst [vmem:[%s647] sm:$0xff] %v645
    %s650 = scalar_lea.vmem %s1, 280
    %v651 = vld [vmem:[%s650] sm:$0xff]
    %v652 = vlaneseq
    %v653 = vand.u32 %v652, 127
    %vm655 = vcmp.lt.s32.totalorder %v653, 36
    %v656 = vsel %vm655, %v651, %v10
    %657 = xla_tuple %v656, %v27
    %658 = xla_tuple %657
    %v659 = vmax.f32 %v656, %v27
    %660 = xla_tuple %v659
    %661 = xla_tuple %v659, %v26
    %662 = xla_tuple %661
    %v663 = vmax.f32 %v659, %v26
    %664 = xla_tuple %v663
    %s665 = scalar_lea.vmem [#allocation9], 280
    %667 = vst [vmem:[%s665] sm:$0xff] %v663
    %s668 = scalar_lea.vmem %s1, 288
    %v669 = vld [vmem:[%s668] sm:$0xff]
    %v670 = vlaneseq
    %v671 = vand.u32 %v670, 127
    %vm673 = vcmp.lt.s32.totalorder %v671, 36
    %v674 = vsel %vm673, %v669, %v10
    %675 = xla_tuple %v674, %v27
    %676 = xla_tuple %675
    %v677 = vmax.f32 %v674, %v27
    %678 = xla_tuple %v677
    %679 = xla_tuple %v677, %v26
    %680 = xla_tuple %679
    %v681 = vmax.f32 %v677, %v26
    %682 = xla_tuple %v681
    %s683 = scalar_lea.vmem [#allocation9], 288
    %685 = vst [vmem:[%s683] sm:$0xff] %v681
    %s686 = scalar_lea.vmem %s1, 296
    %v687 = vld [vmem:[%s686] sm:$0xff]
    %v688 = vlaneseq
    %v689 = vand.u32 %v688, 127
    %vm691 = vcmp.lt.s32.totalorder %v689, 36
    %v692 = vsel %vm691, %v687, %v10
    %693 = xla_tuple %v692, %v27
    %694 = xla_tuple %693
    %v695 = vmax.f32 %v692, %v27
    %696 = xla_tuple %v695
    %697 = xla_tuple %v695, %v26
    %698 = xla_tuple %697
    %v699 = vmax.f32 %v695, %v26
    %700 = xla_tuple %v699
    %s701 = scalar_lea.vmem [#allocation9], 296
    %703 = vst [vmem:[%s701] sm:$0xff] %v699
    %s704 = scalar_lea.vmem %s1, 304
    %v705 = vld [vmem:[%s704] sm:$0xff]
    %v706 = vlaneseq
    %v707 = vand.u32 %v706, 127
    %vm709 = vcmp.lt.s32.totalorder %v707, 36
    %v710 = vsel %vm709, %v705, %v10
    %711 = xla_tuple %v710, %v27
    %712 = xla_tuple %711
    %v713 = vmax.f32 %v710, %v27
    %714 = xla_tuple %v713
    %715 = xla_tuple %v713, %v26
    %716 = xla_tuple %715
    %v717 = vmax.f32 %v713, %v26
    %718 = xla_tuple %v717
    %s719 = scalar_lea.vmem [#allocation9], 304
    %721 = vst [vmem:[%s719] sm:$0xff] %v717
    %s722 = scalar_lea.vmem %s1, 312
    %v723 = vld [vmem:[%s722] sm:$0xff]
    %v724 = vlaneseq
    %v725 = vand.u32 %v724, 127
    %vm727 = vcmp.lt.s32.totalorder %v725, 36
    %v728 = vsel %vm727, %v723, %v10
    %729 = xla_tuple %v728, %v27
    %730 = xla_tuple %729
    %v731 = vmax.f32 %v728, %v27
    %732 = xla_tuple %v731
    %733 = xla_tuple %v731, %v26
    %734 = xla_tuple %733
    %v735 = vmax.f32 %v731, %v26
    %736 = xla_tuple %v735
    %s737 = scalar_lea.vmem [#allocation9], 312
    %739 = vst [vmem:[%s737] sm:$0xff] %v735
    %s740 = scalar_lea.vmem %s1, 320
    %v741 = vld [vmem:[%s740] sm:$0xff]
    %v742 = vlaneseq
    %v743 = vand.u32 %v742, 127
    %vm745 = vcmp.lt.s32.totalorder %v743, 36
    %v746 = vsel %vm745, %v741, %v10
    %747 = xla_tuple %v746, %v27
    %748 = xla_tuple %747
    %v749 = vmax.f32 %v746, %v27
    %750 = xla_tuple %v749
    %751 = xla_tuple %v749, %v26
    %752 = xla_tuple %751
    %v753 = vmax.f32 %v749, %v26
    %754 = xla_tuple %v753
    %s755 = scalar_lea.vmem [#allocation9], 320
    %757 = vst [vmem:[%s755] sm:$0xff] %v753
    %s758 = scalar_lea.vmem %s1, 328
    %v759 = vld [vmem:[%s758] sm:$0xff]
    %v760 = vlaneseq
    %v761 = vand.u32 %v760, 127
    %vm763 = vcmp.lt.s32.totalorder %v761, 36
    %v764 = vsel %vm763, %v759, %v10
    %765 = xla_tuple %v764, %v27
    %766 = xla_tuple %765
    %v767 = vmax.f32 %v764, %v27
    %768 = xla_tuple %v767
    %769 = xla_tuple %v767, %v26
    %770 = xla_tuple %769
    %v771 = vmax.f32 %v767, %v26
    %772 = xla_tuple %v771
    %s773 = scalar_lea.vmem [#allocation9], 328
    %775 = vst [vmem:[%s773] sm:$0xff] %v771
    %s776 = scalar_lea.vmem %s1, 336
    %v777 = vld [vmem:[%s776] sm:$0xff]
    %v778 = vlaneseq
    %v779 = vand.u32 %v778, 127
    %vm781 = vcmp.lt.s32.totalorder %v779, 36
    %v782 = vsel %vm781, %v777, %v10
    %783 = xla_tuple %v782, %v27
    %784 = xla_tuple %783
    %v785 = vmax.f32 %v782, %v27
    %786 = xla_tuple %v785
    %787 = xla_tuple %v785, %v26
    %788 = xla_tuple %787
    %v789 = vmax.f32 %v785, %v26
    %790 = xla_tuple %v789
    %s791 = scalar_lea.vmem [#allocation9], 336
    %793 = vst [vmem:[%s791] sm:$0xff] %v789
    %s794 = scalar_lea.vmem %s1, 344
    %v795 = vld [vmem:[%s794] sm:$0xff]
    %v796 = vlaneseq
    %v797 = vand.u32 %v796, 127
    %vm799 = vcmp.lt.s32.totalorder %v797, 36
    %v800 = vsel %vm799, %v795, %v10
    %801 = xla_tuple %v800, %v27
    %802 = xla_tuple %801
    %v803 = vmax.f32 %v800, %v27
    %804 = xla_tuple %v803
    %805 = xla_tuple %v803, %v26
    %806 = xla_tuple %805
    %v807 = vmax.f32 %v803, %v26
    %808 = xla_tuple %v807
    %s809 = scalar_lea.vmem [#allocation9], 344
    %811 = vst [vmem:[%s809] sm:$0xff] %v807
    %s812 = scalar_lea.vmem %s1, 352
    %v813 = vld [vmem:[%s812] sm:$0xff]
    %v814 = vlaneseq
    %v815 = vand.u32 %v814, 127
    %vm817 = vcmp.lt.s32.totalorder %v815, 36
    %v818 = vsel %vm817, %v813, %v10
    %819 = xla_tuple %v818, %v27
    %820 = xla_tuple %819
    %v821 = vmax.f32 %v818, %v27
    %822 = xla_tuple %v821
    %823 = xla_tuple %v821, %v26
    %824 = xla_tuple %823
    %v825 = vmax.f32 %v821, %v26
    %826 = xla_tuple %v825
    %s827 = scalar_lea.vmem [#allocation9], 352
    %829 = vst [vmem:[%s827] sm:$0xff] %v825
    %s830 = scalar_lea.vmem %s1, 360
    %v831 = vld [vmem:[%s830] sm:$0xff]
    %v832 = vlaneseq
    %v833 = vand.u32 %v832, 127
    %vm835 = vcmp.lt.s32.totalorder %v833, 36
    %v836 = vsel %vm835, %v831, %v10
    %837 = xla_tuple %v836, %v27
    %838 = xla_tuple %837
    %v839 = vmax.f32 %v836, %v27
    %840 = xla_tuple %v839
    %841 = xla_tuple %v839, %v26
    %842 = xla_tuple %841
    %v843 = vmax.f32 %v839, %v26
    %844 = xla_tuple %v843
    %s845 = scalar_lea.vmem [#allocation9], 360
    %847 = vst [vmem:[%s845] sm:$0xff] %v843
    %s848 = scalar_lea.vmem %s1, 368
    %v849 = vld [vmem:[%s848] sm:$0xff]
    %v850 = vlaneseq
    %v851 = vand.u32 %v850, 127
    %vm853 = vcmp.lt.s32.totalorder %v851, 36
    %v854 = vsel %vm853, %v849, %v10
    %855 = xla_tuple %v854, %v27
    %856 = xla_tuple %855
    %v857 = vmax.f32 %v854, %v27
    %858 = xla_tuple %v857
    %859 = xla_tuple %v857, %v26
    %860 = xla_tuple %859
    %v861 = vmax.f32 %v857, %v26
    %862 = xla_tuple %v861
    %s863 = scalar_lea.vmem [#allocation9], 368
    %865 = vst [vmem:[%s863] sm:$0xff] %v861
    %s866 = scalar_lea.vmem %s1, 376
    %v867 = vld [vmem:[%s866] sm:$0xff]
    %v868 = vlaneseq
    %v869 = vand.u32 %v868, 127
    %vm871 = vcmp.lt.s32.totalorder %v869, 36
    %v872 = vsel %vm871, %v867, %v10
    %873 = xla_tuple %v872, %v27
    %874 = xla_tuple %873
    %v875 = vmax.f32 %v872, %v27
    %876 = xla_tuple %v875
    %877 = xla_tuple %v875, %v26
    %878 = xla_tuple %877
    %v879 = vmax.f32 %v875, %v26
    %880 = xla_tuple %v879
    %s881 = scalar_lea.vmem [#allocation9], 376
    %883 = vst [vmem:[%s881] sm:$0xff] %v879
    %s884 = scalar_lea.vmem %s1, 384
    %v885 = vld [vmem:[%s884] sm:$0xff]
    %v886 = vlaneseq
    %v887 = vand.u32 %v886, 127
    %vm889 = vcmp.lt.s32.totalorder %v887, 36
    %v890 = vsel %vm889, %v885, %v10
    %891 = xla_tuple %v890, %v27
    %892 = xla_tuple %891
    %v893 = vmax.f32 %v890, %v27
    %894 = xla_tuple %v893
    %895 = xla_tuple %v893, %v26
    %896 = xla_tuple %895
    %v897 = vmax.f32 %v893, %v26
    %898 = xla_tuple %v897
    %s899 = scalar_lea.vmem [#allocation9], 384
    %901 = vst [vmem:[%s899] sm:$0xff] %v897
    %s902 = scalar_lea.vmem %s1, 392
    %v903 = vld [vmem:[%s902] sm:$0xff]
    %v904 = vlaneseq
    %v905 = vand.u32 %v904, 127
    %vm907 = vcmp.lt.s32.totalorder %v905, 36
    %v908 = vsel %vm907, %v903, %v10
    %909 = xla_tuple %v908, %v27
    %910 = xla_tuple %909
    %v911 = vmax.f32 %v908, %v27
    %912 = xla_tuple %v911
    %913 = xla_tuple %v911, %v26
    %914 = xla_tuple %913
    %v915 = vmax.f32 %v911, %v26
    %916 = xla_tuple %v915
    %s917 = scalar_lea.vmem [#allocation9], 392
    %919 = vst [vmem:[%s917] sm:$0xff] %v915
    %s920 = scalar_lea.vmem %s1, 400
    %v921 = vld [vmem:[%s920] sm:$0xff]
    %v922 = vlaneseq
    %v923 = vand.u32 %v922, 127
    %vm925 = vcmp.lt.s32.totalorder %v923, 36
    %v926 = vsel %vm925, %v921, %v10
    %927 = xla_tuple %v926, %v27
    %928 = xla_tuple %927
    %v929 = vmax.f32 %v926, %v27
    %930 = xla_tuple %v929
    %931 = xla_tuple %v929, %v26
    %932 = xla_tuple %931
    %v933 = vmax.f32 %v929, %v26
    %934 = xla_tuple %v933
    %s935 = scalar_lea.vmem [#allocation9], 400
    %937 = vst [vmem:[%s935] sm:$0xff] %v933
    %s938 = scalar_lea.vmem %s1, 408
    %v939 = vld [vmem:[%s938] sm:$0xff]
    %v940 = vlaneseq
    %v941 = vand.u32 %v940, 127
    %vm943 = vcmp.lt.s32.totalorder %v941, 36
    %v944 = vsel %vm943, %v939, %v10
    %945 = xla_tuple %v944, %v27
    %946 = xla_tuple %945
    %v947 = vmax.f32 %v944, %v27
    %948 = xla_tuple %v947
    %949 = xla_tuple %v947, %v26
    %950 = xla_tuple %949
    %v951 = vmax.f32 %v947, %v26
    %952 = xla_tuple %v951
    %s953 = scalar_lea.vmem [#allocation9], 408
    %955 = vst [vmem:[%s953] sm:$0xff] %v951
    %s956 = scalar_lea.vmem %s1, 416
    %v957 = vld [vmem:[%s956] sm:$0xff]
    %v958 = vlaneseq
    %v959 = vand.u32 %v958, 127
    %vm961 = vcmp.lt.s32.totalorder %v959, 36
    %v962 = vsel %vm961, %v957, %v10
    %963 = xla_tuple %v962, %v27
    %964 = xla_tuple %963
    %v965 = vmax.f32 %v962, %v27
    %966 = xla_tuple %v965
    %967 = xla_tuple %v965, %v26
    %968 = xla_tuple %967
    %v969 = vmax.f32 %v965, %v26
    %970 = xla_tuple %v969
    %s971 = scalar_lea.vmem [#allocation9], 416
    %973 = vst [vmem:[%s971] sm:$0xff] %v969
    %s974 = scalar_lea.vmem %s1, 424
    %v975 = vld [vmem:[%s974] sm:$0xff]
    %v976 = vlaneseq
    %v977 = vand.u32 %v976, 127
    %vm979 = vcmp.lt.s32.totalorder %v977, 36
    %v980 = vsel %vm979, %v975, %v10
    %981 = xla_tuple %v980, %v27
    %982 = xla_tuple %981
    %v983 = vmax.f32 %v980, %v27
    %984 = xla_tuple %v983
    %985 = xla_tuple %v983, %v26
    %986 = xla_tuple %985
    %v987 = vmax.f32 %v983, %v26
    %988 = xla_tuple %v987
    %s989 = scalar_lea.vmem [#allocation9], 424
    %991 = vst [vmem:[%s989] sm:$0xff] %v987
    %s992 = scalar_lea.vmem %s1, 432
    %v993 = vld [vmem:[%s992] sm:$0xff]
    %v994 = vlaneseq
    %v995 = vand.u32 %v994, 127
    %vm997 = vcmp.lt.s32.totalorder %v995, 36
    %v998 = vsel %vm997, %v993, %v10
    %999 = xla_tuple %v998, %v27
    %1000 = xla_tuple %999
    %v1001 = vmax.f32 %v998, %v27
    %1002 = xla_tuple %v1001
    %1003 = xla_tuple %v1001, %v26
    %1004 = xla_tuple %1003
    %v1005 = vmax.f32 %v1001, %v26
    %1006 = xla_tuple %v1005
    %s1007 = scalar_lea.vmem [#allocation9], 432
    %1009 = vst [vmem:[%s1007] sm:$0xff] %v1005
    %s1010 = scalar_lea.vmem %s1, 440
    %v1011 = vld [vmem:[%s1010] sm:$0xff]
    %v1012 = vlaneseq
    %v1013 = vand.u32 %v1012, 127
    %vm1015 = vcmp.lt.s32.totalorder %v1013, 36
    %v1016 = vsel %vm1015, %v1011, %v10
    %1017 = xla_tuple %v1016, %v27
    %1018 = xla_tuple %1017
    %v1019 = vmax.f32 %v1016, %v27
    %1020 = xla_tuple %v1019
    %1021 = xla_tuple %v1019, %v26
    %1022 = xla_tuple %1021
    %v1023 = vmax.f32 %v1019, %v26
    %1024 = xla_tuple %v1023
    %s1025 = scalar_lea.vmem [#allocation9], 440
    %1027 = vst [vmem:[%s1025] sm:$0xff] %v1023
    %s1028 = scalar_lea.vmem %s1, 448
    %v1029 = vld [vmem:[%s1028] sm:$0xff]
    %v1030 = vlaneseq
    %v1031 = vand.u32 %v1030, 127
    %vm1033 = vcmp.lt.s32.totalorder %v1031, 36
    %v1034 = vsel %vm1033, %v1029, %v10
    %1035 = xla_tuple %v1034, %v27
    %1036 = xla_tuple %1035
    %v1037 = vmax.f32 %v1034, %v27
    %1038 = xla_tuple %v1037
    %1039 = xla_tuple %v1037, %v26
    %1040 = xla_tuple %1039
    %v1041 = vmax.f32 %v1037, %v26
    %1042 = xla_tuple %v1041
    %s1043 = scalar_lea.vmem [#allocation9], 448
    %1045 = vst [vmem:[%s1043] sm:$0xff] %v1041
    %s1046 = scalar_lea.vmem %s1, 456
    %v1047 = vld [vmem:[%s1046] sm:$0xff]
    %v1048 = vlaneseq
    %v1049 = vand.u32 %v1048, 127
    %vm1051 = vcmp.lt.s32.totalorder %v1049, 36
    %v1052 = vsel %vm1051, %v1047, %v10
    %1053 = xla_tuple %v1052, %v27
    %1054 = xla_tuple %1053
    %v1055 = vmax.f32 %v1052, %v27
    %1056 = xla_tuple %v1055
    %1057 = xla_tuple %v1055, %v26
    %1058 = xla_tuple %1057
    %v1059 = vmax.f32 %v1055, %v26
    %1060 = xla_tuple %v1059
    %s1061 = scalar_lea.vmem [#allocation9], 456
    %1063 = vst [vmem:[%s1061] sm:$0xff] %v1059
    %s1064 = scalar_lea.vmem %s1, 464
    %v1065 = vld [vmem:[%s1064] sm:$0xff]
    %v1066 = vlaneseq
    %v1067 = vand.u32 %v1066, 127
    %vm1069 = vcmp.lt.s32.totalorder %v1067, 36
    %v1070 = vsel %vm1069, %v1065, %v10
    %1071 = xla_tuple %v1070, %v27
    %1072 = xla_tuple %1071
    %v1073 = vmax.f32 %v1070, %v27
    %1074 = xla_tuple %v1073
    %1075 = xla_tuple %v1073, %v26
    %1076 = xla_tuple %1075
    %v1077 = vmax.f32 %v1073, %v26
    %1078 = xla_tuple %v1077
    %s1079 = scalar_lea.vmem [#allocation9], 464
    %1081 = vst [vmem:[%s1079] sm:$0xff] %v1077
    %s1082 = scalar_lea.vmem %s1, 472
    %v1083 = vld [vmem:[%s1082] sm:$0xff]
    %v1084 = vlaneseq
    %v1085 = vand.u32 %v1084, 127
    %vm1087 = vcmp.lt.s32.totalorder %v1085, 36
    %v1088 = vsel %vm1087, %v1083, %v10
    %1089 = xla_tuple %v1088, %v27
    %1090 = xla_tuple %1089
    %v1091 = vmax.f32 %v1088, %v27
    %1092 = xla_tuple %v1091
    %1093 = xla_tuple %v1091, %v26
    %1094 = xla_tuple %1093
    %v1095 = vmax.f32 %v1091, %v26
    %1096 = xla_tuple %v1095
    %s1097 = scalar_lea.vmem [#allocation9], 472
    %1099 = vst [vmem:[%s1097] sm:$0xff] %v1095
    %s1100 = scalar_lea.vmem %s1, 480
    %v1101 = vld [vmem:[%s1100] sm:$0xff]
    %v1102 = vlaneseq
    %v1103 = vand.u32 %v1102, 127
    %vm1105 = vcmp.lt.s32.totalorder %v1103, 36
    %v1106 = vsel %vm1105, %v1101, %v10
    %1107 = xla_tuple %v1106, %v27
    %1108 = xla_tuple %1107
    %v1109 = vmax.f32 %v1106, %v27
    %1110 = xla_tuple %v1109
    %1111 = xla_tuple %v1109, %v26
    %1112 = xla_tuple %1111
    %v1113 = vmax.f32 %v1109, %v26
    %1114 = xla_tuple %v1113
    %s1115 = scalar_lea.vmem [#allocation9], 480
    %1117 = vst [vmem:[%s1115] sm:$0xff] %v1113
    %s1118 = scalar_lea.vmem %s1, 488
    %v1119 = vld [vmem:[%s1118] sm:$0xff]
    %v1120 = vlaneseq
    %v1121 = vand.u32 %v1120, 127
    %vm1123 = vcmp.lt.s32.totalorder %v1121, 36
    %v1124 = vsel %vm1123, %v1119, %v10
    %1125 = xla_tuple %v1124, %v27
    %1126 = xla_tuple %1125
    %v1127 = vmax.f32 %v1124, %v27
    %1128 = xla_tuple %v1127
    %1129 = xla_tuple %v1127, %v26
    %1130 = xla_tuple %1129
    %v1131 = vmax.f32 %v1127, %v26
    %1132 = xla_tuple %v1131
    %s1133 = scalar_lea.vmem [#allocation9], 488
    %1135 = vst [vmem:[%s1133] sm:$0xff] %v1131
    %s1136 = scalar_lea.vmem %s1, 496
    %v1137 = vld [vmem:[%s1136] sm:$0xff]
    %v1138 = vlaneseq
    %v1139 = vand.u32 %v1138, 127
    %vm1141 = vcmp.lt.s32.totalorder %v1139, 36
    %v1142 = vsel %vm1141, %v1137, %v10
    %1143 = xla_tuple %v1142, %v27
    %1144 = xla_tuple %1143
    %v1145 = vmax.f32 %v1142, %v27
    %1146 = xla_tuple %v1145
    %1147 = xla_tuple %v1145, %v26
    %1148 = xla_tuple %1147
    %v1149 = vmax.f32 %v1145, %v26
    %1150 = xla_tuple %v1149
    %s1151 = scalar_lea.vmem [#allocation9], 496
    %1153 = vst [vmem:[%s1151] sm:$0xff] %v1149
    %s1154 = scalar_lea.vmem %s1, 504
    %v1155 = vld [vmem:[%s1154] sm:$0xff]
    %v1156 = vlaneseq
    %v1157 = vand.u32 %v1156, 127
    %vm1159 = vcmp.lt.s32.totalorder %v1157, 36
    %v1160 = vsel %vm1159, %v1155, %v10
    %1161 = xla_tuple %v1160, %v27
    %1162 = xla_tuple %1161
    %v1163 = vmax.f32 %v1160, %v27
    %1164 = xla_tuple %v1163
    %1165 = xla_tuple %v1163, %v26
    %1166 = xla_tuple %1165
    %v1167 = vmax.f32 %v1163, %v26
    %1168 = xla_tuple %v1167
    %s1169 = scalar_lea.vmem [#allocation9], 504
    %1171 = vst [vmem:[%s1169] sm:$0xff] %v1167
    %v1172 = vld [vmem:[#allocation9] sm:$0xff]
    %v1173 = vld [vmem:[#allocation9 + $0x8] sm:$0xff]
    %v1174 = vld [vmem:[#allocation9 + $0x10] sm:$0xff]
    %v1175 = vld [vmem:[#allocation9 + $0x18] sm:$0xff]
    %v1176 = vld [vmem:[#allocation9 + $0x20] sm:$0xff]
    %v1177 = vld [vmem:[#allocation9 + $0x28] sm:$0xff]
    %v1178 = vld [vmem:[#allocation9 + $0x30] sm:$0xff]
    %v1179 = vld [vmem:[#allocation9 + $0x38] sm:$0xff]
    %v1180 = vld [vmem:[#allocation9 + $0x40] sm:$0xff]
    %v1181 = vld [vmem:[#allocation9 + $0x48] sm:$0xff]
    %v1182 = vld [vmem:[#allocation9 + $0x50] sm:$0xff]
    %v1183 = vld [vmem:[#allocation9 + $0x58] sm:$0xff]
    %v1184 = vld [vmem:[#allocation9 + $0x60] sm:$0xff]
    %v1185 = vld [vmem:[#allocation9 + $0x68] sm:$0xff]
    %v1186 = vld [vmem:[#allocation9 + $0x70] sm:$0xff]
    %v1187 = vld [vmem:[#allocation9 + $0x78] sm:$0xff]
    %v1188 = vld [vmem:[#allocation9 + $0x80] sm:$0xff]
    %v1189 = vld [vmem:[#allocation9 + $0x88] sm:$0xff]
    %v1190 = vld [vmem:[#allocation9 + $0x90] sm:$0xff]
    %v1191 = vld [vmem:[#allocation9 + $0x98] sm:$0xff]
    %v1192 = vld [vmem:[#allocation9 + $0xa0] sm:$0xff]
    %v1193 = vld [vmem:[#allocation9 + $0xa8] sm:$0xff]
    %v1194 = vld [vmem:[#allocation9 + $0xb0] sm:$0xff]
    %v1195 = vld [vmem:[#allocation9 + $0xb8] sm:$0xff]
    %v1196 = vld [vmem:[#allocation9 + $0xc0] sm:$0xff]
    %v1197 = vld [vmem:[#allocation9 + $0xc8] sm:$0xff]
    %v1198 = vld [vmem:[#allocation9 + $0xd0] sm:$0xff]
    %v1199 = vld [vmem:[#allocation9 + $0xd8] sm:$0xff]
    %v1200 = vld [vmem:[#allocation9 + $0xe0] sm:$0xff]
    %v1201 = vld [vmem:[#allocation9 + $0xe8] sm:$0xff]
    %v1202 = vld [vmem:[#allocation9 + $0xf0] sm:$0xff]
    %v1203 = vld [vmem:[#allocation9 + $0xf8] sm:$0xff]
    %v1204 = vld [vmem:[#allocation9 + $0x100] sm:$0xff]
    %v1205 = vld [vmem:[#allocation9 + $0x108] sm:$0xff]
    %v1206 = vld [vmem:[#allocation9 + $0x110] sm:$0xff]
    %v1207 = vld [vmem:[#allocation9 + $0x118] sm:$0xff]
    %v1208 = vld [vmem:[#allocation9 + $0x120] sm:$0xff]
    %v1209 = vld [vmem:[#allocation9 + $0x128] sm:$0xff]
    %v1210 = vld [vmem:[#allocation9 + $0x130] sm:$0xff]
    %v1211 = vld [vmem:[#allocation9 + $0x138] sm:$0xff]
    %v1212 = vld [vmem:[#allocation9 + $0x140] sm:$0xff]
    %v1213 = vld [vmem:[#allocation9 + $0x148] sm:$0xff]
    %v1214 = vld [vmem:[#allocation9 + $0x150] sm:$0xff]
    %v1215 = vld [vmem:[#allocation9 + $0x158] sm:$0xff]
    %v1216 = vld [vmem:[#allocation9 + $0x160] sm:$0xff]
    %v1217 = vld [vmem:[#allocation9 + $0x168] sm:$0xff]
    %v1218 = vld [vmem:[#allocation9 + $0x170] sm:$0xff]
    %v1219 = vld [vmem:[#allocation9 + $0x178] sm:$0xff]
    %v1220 = vld [vmem:[#allocation9 + $0x180] sm:$0xff]
    %v1221 = vld [vmem:[#allocation9 + $0x188] sm:$0xff]
    %v1222 = vld [vmem:[#allocation9 + $0x190] sm:$0xff]
    %v1223 = vld [vmem:[#allocation9 + $0x198] sm:$0xff]
    %v1224 = vld [vmem:[#allocation9 + $0x1a0] sm:$0xff]
    %v1225 = vld [vmem:[#allocation9 + $0x1a8] sm:$0xff]
    %v1226 = vld [vmem:[#allocation9 + $0x1b0] sm:$0xff]
    %v1227 = vld [vmem:[#allocation9 + $0x1b8] sm:$0xff]
    %v1228 = vld [vmem:[#allocation9 + $0x1c0] sm:$0xff]
    %v1229 = vld [vmem:[#allocation9 + $0x1c8] sm:$0xff]
    %v1230 = vld [vmem:[#allocation9 + $0x1d0] sm:$0xff]
    %v1231 = vld [vmem:[#allocation9 + $0x1d8] sm:$0xff]
    %v1232 = vld [vmem:[#allocation9 + $0x1e0] sm:$0xff]
    %v1233 = vld [vmem:[#allocation9 + $0x1e8] sm:$0xff]
    %v1234 = vld [vmem:[#allocation9 + $0x1f0] sm:$0xff]
    %v1235 = vld [vmem:[#allocation9 + $0x1f8] sm:$0xff]
    %v1236 = vld [vmem:[%s0] sm:$0xff]
    %v1237 = vld [vmem:[%s0 + $0x8] sm:$0xff]
    %v1238 = vld [vmem:[%s0 + $0x10] sm:$0xff]
    %v1239 = vld [vmem:[%s0 + $0x18] sm:$0xff]
    %v1240 = vld [vmem:[%s0 + $0x20] sm:$0xff]
    %vm1241 = vcmask 326656
    %v1243 = vsel %vm1241, %v1172, 0
    %v1246 = vsel %vm1241, %v1173, 0
    %v1249 = vsel %vm1241, %v1174, 0
    %v1252 = vsel %vm1241, %v1175, 0
    %v1255 = vsel %vm1241, %v1176, 0
    %v1258 = vsel %vm1241, %v1177, 0
    %v1261 = vsel %vm1241, %v1178, 0
    %v1264 = vsel %vm1241, %v1179, 0
    %v1267 = vsel %vm1241, %v1180, 0
    %v1270 = vsel %vm1241, %v1181, 0
    %v1273 = vsel %vm1241, %v1182, 0
    %v1276 = vsel %vm1241, %v1183, 0
    %v1279 = vsel %vm1241, %v1184, 0
    %v1282 = vsel %vm1241, %v1185, 0
    %v1285 = vsel %vm1241, %v1186, 0
    %v1288 = vsel %vm1241, %v1187, 0
    %v1291 = vsel %vm1241, %v1188, 0
    %v1294 = vsel %vm1241, %v1189, 0
    %v1297 = vsel %vm1241, %v1190, 0
    %v1300 = vsel %vm1241, %v1191, 0
    %v1303 = vsel %vm1241, %v1192, 0
    %v1306 = vsel %vm1241, %v1193, 0
    %v1309 = vsel %vm1241, %v1194, 0
    %v1312 = vsel %vm1241, %v1195, 0
    %v1315 = vsel %vm1241, %v1196, 0
    %v1318 = vsel %vm1241, %v1197, 0
    %v1321 = vsel %vm1241, %v1198, 0
    %v1324 = vsel %vm1241, %v1199, 0
    %v1327 = vsel %vm1241, %v1200, 0
    %v1330 = vsel %vm1241, %v1201, 0
    %v1333 = vsel %vm1241, %v1202, 0
    %v1336 = vsel %vm1241, %v1203, 0
    %v1339 = vsel %vm1241, %v1204, 0
    %v1342 = vsel %vm1241, %v1205, 0
    %v1345 = vsel %vm1241, %v1206, 0
    %v1348 = vsel %vm1241, %v1207, 0
    %v1351 = vsel %vm1241, %v1208, 0
    %v1354 = vsel %vm1241, %v1209, 0
    %v1357 = vsel %vm1241, %v1210, 0
    %v1360 = vsel %vm1241, %v1211, 0
    %v1363 = vsel %vm1241, %v1212, 0
    %v1366 = vsel %vm1241, %v1213, 0
    %v1369 = vsel %vm1241, %v1214, 0
    %v1372 = vsel %vm1241, %v1215, 0
    %v1375 = vsel %vm1241, %v1216, 0
    %v1378 = vsel %vm1241, %v1217, 0
    %v1381 = vsel %vm1241, %v1218, 0
    %v1384 = vsel %vm1241, %v1219, 0
    %v1387 = vsel %vm1241, %v1220, 0
    %v1390 = vsel %vm1241, %v1221, 0
    %v1393 = vsel %vm1241, %v1222, 0
    %v1396 = vsel %vm1241, %v1223, 0
    %v1399 = vsel %vm1241, %v1224, 0
    %v1402 = vsel %vm1241, %v1225, 0
    %v1405 = vsel %vm1241, %v1226, 0
    %v1408 = vsel %vm1241, %v1227, 0
    %v1411 = vsel %vm1241, %v1228, 0
    %v1414 = vsel %vm1241, %v1229, 0
    %v1417 = vsel %vm1241, %v1230, 0
    %v1420 = vsel %vm1241, %v1231, 0
    %v1423 = vsel %vm1241, %v1232, 0
    %v1426 = vsel %vm1241, %v1233, 0
    %v1429 = vsel %vm1241, %v1234, 0
    %v1432 = vsel %vm1241, %v1235, 0
    %1434 = vmatprep.subr.mxu0 0.0
    %1435 = vmatpush1.msra.mxu0 %v1236
    %1436 = vmatprep.subr.mxu0 0.0
    %1437 = vmatpush1.msra.mxu0 %v1237
    %1438 = vmatprep.subr.mxu0 0.0
    %1439 = vmatpush1.msra.mxu0 %v1238
    %1440 = vmatprep.subr.mxu0 0.0
    %1441 = vmatpush1.msra.mxu0 %v1239
    %1442 = vmatprep.subr.mxu0 0.0
    %1443 = vmatpush1.msra.mxu0 %v1240
    %1444 = vmatprep.subr.mxu0 0.0
    %1445 = vmatpush1.msra.mxu0 0.0
    %1446 = vmatprep.subr.mxu0 0.0
    %1447 = vmatpush1.msra.mxu0 0.0
    %1448 = vmatprep.subr.mxu0 0.0
    %1449 = vmatpush1.msra.mxu0 0.0
    %1450 = vmatprep.subr.mxu0 0.0
    %1451 = vmatpush1.msra.mxu0 0.0
    %1452 = vmatprep.subr.mxu0 0.0
    %1453 = vmatpush1.msra.mxu0 0.0
    %1454 = vmatprep.subr.mxu0 0.0
    %1455 = vmatpush1.msra.mxu0 0.0
    %1456 = vmatprep.subr.mxu0 0.0
    %1457 = vmatpush1.msra.mxu0 0.0
    %1458 = vmatprep.subr.mxu0 0.0
    %1459 = vmatpush1.msra.mxu0 0.0
    %1460 = vmatprep.subr.mxu0 0.0
    %1461 = vmatpush1.msra.mxu0 0.0
    %1462 = vmatprep.subr.mxu0 0.0
    %1463 = vmatpush1.msra.mxu0 0.0
    %1464 = vmatprep.subr.mxu0 0.0
    %1465 = vmatpush1.msra.mxu0 0.0
    %1466 = vmatprep.subr.mxu0 0.0
    %1467 = vmatpush1.msra.mxu0 0.0
    %1468 = vmatprep.subr.mxu0 0.0
    %1469 = vmatpush1.msra.mxu0 0.0
    %1470 = vmatprep.subr.mxu0 0.0
    %1471 = vmatpush1.msra.mxu0 0.0
    %1472 = vmatprep.subr.mxu0 0.0
    %1473 = vmatpush1.msra.mxu0 0.0
    %1474 = vmatprep.subr.mxu0 0.0
    %1475 = vmatpush1.msra.mxu0 0.0
    %1476 = vmatprep.subr.mxu0 0.0
    %1477 = vmatpush1.msra.mxu0 0.0
    %1478 = vmatprep.subr.mxu0 0.0
    %1479 = vmatpush1.msra.mxu0 0.0
    %1480 = vmatprep.subr.mxu0 0.0
    %1481 = vmatpush1.msra.mxu0 0.0
    %1482 = vmatprep.subr.mxu0 0.0
    %1483 = vmatpush1.msra.mxu0 0.0
    %1484 = vmatprep.subr.mxu0 0.0
    %1485 = vmatpush1.msra.mxu0 0.0
    %1486 = vmatprep.subr.mxu0 0.0
    %1487 = vmatpush1.msra.mxu0 0.0
    %1488 = vmatprep.subr.mxu0 0.0
    %1489 = vmatpush1.msra.mxu0 0.0
    %1490 = vmatprep.subr.mxu0 0.0
    %1491 = vmatpush1.msra.mxu0 0.0
    %1492 = vmatprep.subr.mxu0 0.0
    %1493 = vmatpush1.msra.mxu0 0.0
    %1494 = vmatprep.subr.mxu0 0.0
    %1495 = vmatpush1.msra.mxu0 0.0
    %1496 = vmatprep.subr.mxu0 0.0
    %1497 = vmatpush1.msra.mxu0 0.0
    %1498 = vmatprep.mubr.f32.mxu0 0.0
    %1499 = vmatmul.mubr.f32.gmra.mrb[0].mxu0 %v1243
    %v1500 = vpop.f32.mrb[0].mxu0
    %v1501 = vadd.f32 0.0, %v1500
    %v1502 = vpop.f32.mrb[0].mxu0
    %1503 = vmatprep.mubr.f32.mxu0 0.0
    %1504 = vmatmul.mubr.f32.gmra.mrb[0].mxu0 %v1246
    %v1505 = vpop.f32.mrb[0].mxu0
    %v1506 = vadd.f32 0.0, %v1505
    %v1507 = vpop.f32.mrb[0].mxu0
    %1508 = vmatprep.mubr.f32.mxu0 0.0
    %1509 = vmatmul.mubr.f32.gmra.mrb[0].mxu0 %v1249
    %v1510 = vpop.f32.mrb[0].mxu0
    %v1511 = vadd.f32 0.0, %v1510
    %v1512 = vpop.f32.mrb[0].mxu0
    %1513 = vmatprep.mubr.f32.mxu0 0.0
    %1514 = vmatmul.mubr.f32.gmra.mrb[0].mxu0 %v1252
    %v1515 = vpop.f32.mrb[0].mxu0
    %v1516 = vadd.f32 0.0, %v1515
    %v1517 = vpop.f32.mrb[0].mxu0
    %1518 = vmatprep.mubr.f32.mxu0 0.0
    %1519 = vmatmul.mubr.f32.gmra.mrb[0].mxu0 %v1255
    %v1520 = vpop.f32.mrb[0].mxu0
    %v1521 = vadd.f32 0.0, %v1520
    %v1522 = vpop.f32.mrb[0].mxu0
    %1523 = vmatprep.mubr.f32.mxu0 0.0
    %1524 = vmatmul.mubr.f32.gmra.mrb[0].mxu0 %v1258
    %v1525 = vpop.f32.mrb[0].mxu0
    %v1526 = vadd.f32 0.0, %v1525
    %v1527 = vpop.f32.mrb[0].mxu0
    %1528 = vmatprep.mubr.f32.mxu0 0.0
    %1529 = vmatmul.mubr.f32.gmra.mrb[0].mxu0 %v1261
    %v1530 = vpop.f32.mrb[0].mxu0
    %v1531 = vadd.f32 0.0, %v1530
    %v1532 = vpop.f32.mrb[0].mxu0
    %1533 = vmatprep.mubr.f32.mxu0 0.0
    %1534 = vmatmul.mubr.f32.gmra.mrb[0].mxu0 %v1264
    %v1535 = vpop.f32.mrb[0].mxu0
    %v1536 = vadd.f32 0.0, %v1535
    %v1537 = vpop.f32.mrb[0].mxu0
    %1538 = vmatprep.mubr.f32.mxu0 0.0
    %1539 = vmatmul.mubr.f32.gmra.mrb[0].mxu0 %v1267
    %v1540 = vpop.f32.mrb[0].mxu0
    %v1541 = vadd.f32 0.0, %v1540
    %v1542 = vpop.f32.mrb[0].mxu0
    %1543 = vmatprep.mubr.f32.mxu0 0.0
    %1544 = vmatmul.mubr.f32.gmra.mrb[0].mxu0 %v1270
    %v1545 = vpop.f32.mrb[0].mxu0
    %v1546 = vadd.f32 0.0, %v1545
    %v1547 = vpop.f32.mrb[0].mxu0
    %1548 = vmatprep.mubr.f32.mxu0 0.0
    %1549 = vmatmul.mubr.f32.gmra.mrb[0].mxu0 %v1273
    %v1550 = vpop.f32.mrb[0].mxu0
    %v1551 = vadd.f32 0.0, %v1550
    %v1552 = vpop.f32.mrb[0].mxu0
    %1553 = vmatprep.mubr.f32.mxu0 0.0
    %1554 = vmatmul.mubr.f32.gmra.mrb[0].mxu0 %v1276
    %v1555 = vpop.f32.mrb[0].mxu0
    %v1556 = vadd.f32 0.0, %v1555
    %v1557 = vpop.f32.mrb[0].mxu0
    %1558 = vmatprep.mubr.f32.mxu0 0.0
    %1559 = vmatmul.mubr.f32.gmra.mrb[0].mxu0 %v1279
    %v1560 = vpop.f32.mrb[0].mxu0
    %v1561 = vadd.f32 0.0, %v1560
    %v1562 = vpop.f32.mrb[0].mxu0
    %1563 = vmatprep.mubr.f32.mxu0 0.0
    %1564 = vmatmul.mubr.f32.gmra.mrb[0].mxu0 %v1282
    %v1565 = vpop.f32.mrb[0].mxu0
    %v1566 = vadd.f32 0.0, %v1565
    %v1567 = vpop.f32.mrb[0].mxu0
    %1568 = vmatprep.mubr.f32.mxu0 0.0
    %1569 = vmatmul.mubr.f32.gmra.mrb[0].mxu0 %v1285
    %v1570 = vpop.f32.mrb[0].mxu0
    %v1571 = vadd.f32 0.0, %v1570
    %v1572 = vpop.f32.mrb[0].mxu0
    %1573 = vmatprep.mubr.f32.mxu0 0.0
    %1574 = vmatmul.mubr.f32.gmra.mrb[0].mxu0 %v1288
    %v1575 = vpop.f32.mrb[0].mxu0
    %v1576 = vadd.f32 0.0, %v1575
    %v1577 = vpop.f32.mrb[0].mxu0
    %1578 = vmatprep.mubr.f32.mxu0 0.0
    %1579 = vmatmul.mubr.f32.gmra.mrb[0].mxu0 %v1291
    %v1580 = vpop.f32.mrb[0].mxu0
    %v1581 = vadd.f32 0.0, %v1580
    %v1582 = vpop.f32.mrb[0].mxu0
    %1583 = vmatprep.mubr.f32.mxu0 0.0
    %1584 = vmatmul.mubr.f32.gmra.mrb[0].mxu0 %v1294
    %v1585 = vpop.f32.mrb[0].mxu0
    %v1586 = vadd.f32 0.0, %v1585
    %v1587 = vpop.f32.mrb[0].mxu0
    %1588 = vmatprep.mubr.f32.mxu0 0.0
    %1589 = vmatmul.mubr.f32.gmra.mrb[0].mxu0 %v1297
    %v1590 = vpop.f32.mrb[0].mxu0
    %v1591 = vadd.f32 0.0, %v1590
    %v1592 = vpop.f32.mrb[0].mxu0
    %1593 = vmatprep.mubr.f32.mxu0 0.0
    %1594 = vmatmul.mubr.f32.gmra.mrb[0].mxu0 %v1300
    %v1595 = vpop.f32.mrb[0].mxu0
    %v1596 = vadd.f32 0.0, %v1595
    %v1597 = vpop.f32.mrb[0].mxu0
    %1598 = vmatprep.mubr.f32.mxu0 0.0
    %1599 = vmatmul.mubr.f32.gmra.mrb[0].mxu0 %v1303
    %v1600 = vpop.f32.mrb[0].mxu0
    %v1601 = vadd.f32 0.0, %v1600
    %v1602 = vpop.f32.mrb[0].mxu0
    %1603 = vmatprep.mubr.f32.mxu0 0.0
    %1604 = vmatmul.mubr.f32.gmra.mrb[0].mxu0 %v1306
    %v1605 = vpop.f32.mrb[0].mxu0
    %v1606 = vadd.f32 0.0, %v1605
    %v1607 = vpop.f32.mrb[0].mxu0
    %1608 = vmatprep.mubr.f32.mxu0 0.0
    %1609 = vmatmul.mubr.f32.gmra.mrb[0].mxu0 %v1309
    %v1610 = vpop.f32.mrb[0].mxu0
    %v1611 = vadd.f32 0.0, %v1610
    %v1612 = vpop.f32.mrb[0].mxu0
    %1613 = vmatprep.mubr.f32.mxu0 0.0
    %1614 = vmatmul.mubr.f32.gmra.mrb[0].mxu0 %v1312
    %v1615 = vpop.f32.mrb[0].mxu0
    %v1616 = vadd.f32 0.0, %v1615
    %v1617 = vpop.f32.mrb[0].mxu0
    %1618 = vmatprep.mubr.f32.mxu0 0.0
    %1619 = vmatmul.mubr.f32.gmra.mrb[0].mxu0 %v1315
    %v1620 = vpop.f32.mrb[0].mxu0
    %v1621 = vadd.f32 0.0, %v1620
    %v1622 = vpop.f32.mrb[0].mxu0
    %1623 = vmatprep.mubr.f32.mxu0 0.0
    %1624 = vmatmul.mubr.f32.gmra.mrb[0].mxu0 %v1318
    %v1625 = vpop.f32.mrb[0].mxu0
    %v1626 = vadd.f32 0.0, %v1625
    %v1627 = vpop.f32.mrb[0].mxu0
    %1628 = vmatprep.mubr.f32.mxu0 0.0
    %1629 = vmatmul.mubr.f32.gmra.mrb[0].mxu0 %v1321
    %v1630 = vpop.f32.mrb[0].mxu0
    %v1631 = vadd.f32 0.0, %v1630
    %v1632 = vpop.f32.mrb[0].mxu0
    %1633 = vmatprep.mubr.f32.mxu0 0.0
    %1634 = vmatmul.mubr.f32.gmra.mrb[0].mxu0 %v1324
    %v1635 = vpop.f32.mrb[0].mxu0
    %v1636 = vadd.f32 0.0, %v1635
    %v1637 = vpop.f32.mrb[0].mxu0
    %1638 = vmatprep.mubr.f32.mxu0 0.0
    %1639 = vmatmul.mubr.f32.gmra.mrb[0].mxu0 %v1327
    %v1640 = vpop.f32.mrb[0].mxu0
    %v1641 = vadd.f32 0.0, %v1640
    %v1642 = vpop.f32.mrb[0].mxu0
    %1643 = vmatprep.mubr.f32.mxu0 0.0
    %1644 = vmatmul.mubr.f32.gmra.mrb[0].mxu0 %v1330
    %v1645 = vpop.f32.mrb[0].mxu0
    %v1646 = vadd.f32 0.0, %v1645
    %v1647 = vpop.f32.mrb[0].mxu0
    %1648 = vmatprep.mubr.f32.mxu0 0.0
    %1649 = vmatmul.mubr.f32.gmra.mrb[0].mxu0 %v1333
    %v1650 = vpop.f32.mrb[0].mxu0
    %v1651 = vadd.f32 0.0, %v1650
    %v1652 = vpop.f32.mrb[0].mxu0
    %1653 = vmatprep.mubr.f32.mxu0 0.0
    %1654 = vmatmul.mubr.f32.gmra.mrb[0].mxu0 %v1336
    %v1655 = vpop.f32.mrb[0].mxu0
    %v1656 = vadd.f32 0.0, %v1655
    %v1657 = vpop.f32.mrb[0].mxu0
    %1658 = vmatprep.mubr.f32.mxu0 0.0
    %1659 = vmatmul.mubr.f32.gmra.mrb[0].mxu0 %v1339
    %v1660 = vpop.f32.mrb[0].mxu0
    %v1661 = vadd.f32 0.0, %v1660
    %v1662 = vpop.f32.mrb[0].mxu0
    %1663 = vmatprep.mubr.f32.mxu0 0.0
    %1664 = vmatmul.mubr.f32.gmra.mrb[0].mxu0 %v1342
    %v1665 = vpop.f32.mrb[0].mxu0
    %v1666 = vadd.f32 0.0, %v1665
    %v1667 = vpop.f32.mrb[0].mxu0
    %1668 = vmatprep.mubr.f32.mxu0 0.0
    %1669 = vmatmul.mubr.f32.gmra.mrb[0].mxu0 %v1345
    %v1670 = vpop.f32.mrb[0].mxu0
    %v1671 = vadd.f32 0.0, %v1670
    %v1672 = vpop.f32.mrb[0].mxu0
    %1673 = vmatprep.mubr.f32.mxu0 0.0
    %1674 = vmatmul.mubr.f32.gmra.mrb[0].mxu0 %v1348
    %v1675 = vpop.f32.mrb[0].mxu0
    %v1676 = vadd.f32 0.0, %v1675
    %v1677 = vpop.f32.mrb[0].mxu0
    %1678 = vmatprep.mubr.f32.mxu0 0.0
    %1679 = vmatmul.mubr.f32.gmra.mrb[0].mxu0 %v1351
    %v1680 = vpop.f32.mrb[0].mxu0
    %v1681 = vadd.f32 0.0, %v1680
    %v1682 = vpop.f32.mrb[0].mxu0
    %1683 = vmatprep.mubr.f32.mxu0 0.0
    %1684 = vmatmul.mubr.f32.gmra.mrb[0].mxu0 %v1354
    %v1685 = vpop.f32.mrb[0].mxu0
    %v1686 = vadd.f32 0.0, %v1685
    %v1687 = vpop.f32.mrb[0].mxu0
    %1688 = vmatprep.mubr.f32.mxu0 0.0
    %1689 = vmatmul.mubr.f32.gmra.mrb[0].mxu0 %v1357
    %v1690 = vpop.f32.mrb[0].mxu0
    %v1691 = vadd.f32 0.0, %v1690
    %v1692 = vpop.f32.mrb[0].mxu0
    %1693 = vmatprep.mubr.f32.mxu0 0.0
    %1694 = vmatmul.mubr.f32.gmra.mrb[0].mxu0 %v1360
    %v1695 = vpop.f32.mrb[0].mxu0
    %v1696 = vadd.f32 0.0, %v1695
    %v1697 = vpop.f32.mrb[0].mxu0
    %1698 = vmatprep.mubr.f32.mxu0 0.0
    %1699 = vmatmul.mubr.f32.gmra.mrb[0].mxu0 %v1363
    %v1700 = vpop.f32.mrb[0].mxu0
    %v1701 = vadd.f32 0.0, %v1700
    %v1702 = vpop.f32.mrb[0].mxu0
    %1703 = vmatprep.mubr.f32.mxu0 0.0
    %1704 = vmatmul.mubr.f32.gmra.mrb[0].mxu0 %v1366
    %v1705 = vpop.f32.mrb[0].mxu0
    %v1706 = vadd.f32 0.0, %v1705
    %v1707 = vpop.f32.mrb[0].mxu0
    %1708 = vmatprep.mubr.f32.mxu0 0.0
    %1709 = vmatmul.mubr.f32.gmra.mrb[0].mxu0 %v1369
    %v1710 = vpop.f32.mrb[0].mxu0
    %v1711 = vadd.f32 0.0, %v1710
    %v1712 = vpop.f32.mrb[0].mxu0
    %1713 = vmatprep.mubr.f32.mxu0 0.0
    %1714 = vmatmul.mubr.f32.gmra.mrb[0].mxu0 %v1372
    %v1715 = vpop.f32.mrb[0].mxu0
    %v1716 = vadd.f32 0.0, %v1715
    %v1717 = vpop.f32.mrb[0].mxu0
    %1718 = vmatprep.mubr.f32.mxu0 0.0
    %1719 = vmatmul.mubr.f32.gmra.mrb[0].mxu0 %v1375
    %v1720 = vpop.f32.mrb[0].mxu0
    %v1721 = vadd.f32 0.0, %v1720
    %v1722 = vpop.f32.mrb[0].mxu0
    %1723 = vmatprep.mubr.f32.mxu0 0.0
    %1724 = vmatmul.mubr.f32.gmra.mrb[0].mxu0 %v1378
    %v1725 = vpop.f32.mrb[0].mxu0
    %v1726 = vadd.f32 0.0, %v1725
    %v1727 = vpop.f32.mrb[0].mxu0
    %1728 = vmatprep.mubr.f32.mxu0 0.0
    %1729 = vmatmul.mubr.f32.gmra.mrb[0].mxu0 %v1381
    %v1730 = vpop.f32.mrb[0].mxu0
    %v1731 = vadd.f32 0.0, %v1730
    %v1732 = vpop.f32.mrb[0].mxu0
    %1733 = vmatprep.mubr.f32.mxu0 0.0
    %1734 = vmatmul.mubr.f32.gmra.mrb[0].mxu0 %v1384
    %v1735 = vpop.f32.mrb[0].mxu0
    %v1736 = vadd.f32 0.0, %v1735
    %v1737 = vpop.f32.mrb[0].mxu0
    %1738 = vmatprep.mubr.f32.mxu0 0.0
    %1739 = vmatmul.mubr.f32.gmra.mrb[0].mxu0 %v1387
    %v1740 = vpop.f32.mrb[0].mxu0
    %v1741 = vadd.f32 0.0, %v1740
    %v1742 = vpop.f32.mrb[0].mxu0
    %1743 = vmatprep.mubr.f32.mxu0 0.0
    %1744 = vmatmul.mubr.f32.gmra.mrb[0].mxu0 %v1390
    %v1745 = vpop.f32.mrb[0].mxu0
    %v1746 = vadd.f32 0.0, %v1745
    %v1747 = vpop.f32.mrb[0].mxu0
    %1748 = vmatprep.mubr.f32.mxu0 0.0
    %1749 = vmatmul.mubr.f32.gmra.mrb[0].mxu0 %v1393
    %v1750 = vpop.f32.mrb[0].mxu0
    %v1751 = vadd.f32 0.0, %v1750
    %v1752 = vpop.f32.mrb[0].mxu0
    %1753 = vmatprep.mubr.f32.mxu0 0.0
    %1754 = vmatmul.mubr.f32.gmra.mrb[0].mxu0 %v1396
    %v1755 = vpop.f32.mrb[0].mxu0
    %v1756 = vadd.f32 0.0, %v1755
    %v1757 = vpop.f32.mrb[0].mxu0
    %1758 = vmatprep.mubr.f32.mxu0 0.0
    %1759 = vmatmul.mubr.f32.gmra.mrb[0].mxu0 %v1399
    %v1760 = vpop.f32.mrb[0].mxu0
    %v1761 = vadd.f32 0.0, %v1760
    %v1762 = vpop.f32.mrb[0].mxu0
    %1763 = vmatprep.mubr.f32.mxu0 0.0
    %1764 = vmatmul.mubr.f32.gmra.mrb[0].mxu0 %v1402
    %v1765 = vpop.f32.mrb[0].mxu0
    %v1766 = vadd.f32 0.0, %v1765
    %v1767 = vpop.f32.mrb[0].mxu0
    %1768 = vmatprep.mubr.f32.mxu0 0.0
    %1769 = vmatmul.mubr.f32.gmra.mrb[0].mxu0 %v1405
    %v1770 = vpop.f32.mrb[0].mxu0
    %v1771 = vadd.f32 0.0, %v1770
    %v1772 = vpop.f32.mrb[0].mxu0
    %1773 = vmatprep.mubr.f32.mxu0 0.0
    %1774 = vmatmul.mubr.f32.gmra.mrb[0].mxu0 %v1408
    %v1775 = vpop.f32.mrb[0].mxu0
    %v1776 = vadd.f32 0.0, %v1775
    %v1777 = vpop.f32.mrb[0].mxu0
    %1778 = vmatprep.mubr.f32.mxu0 0.0
    %1779 = vmatmul.mubr.f32.gmra.mrb[0].mxu0 %v1411
    %v1780 = vpop.f32.mrb[0].mxu0
    %v1781 = vadd.f32 0.0, %v1780
    %v1782 = vpop.f32.mrb[0].mxu0
    %1783 = vmatprep.mubr.f32.mxu0 0.0
    %1784 = vmatmul.mubr.f32.gmra.mrb[0].mxu0 %v1414
    %v1785 = vpop.f32.mrb[0].mxu0
    %v1786 = vadd.f32 0.0, %v1785
    %v1787 = vpop.f32.mrb[0].mxu0
    %1788 = vmatprep.mubr.f32.mxu0 0.0
    %1789 = vmatmul.mubr.f32.gmra.mrb[0].mxu0 %v1417
    %v1790 = vpop.f32.mrb[0].mxu0
    %v1791 = vadd.f32 0.0, %v1790
    %v1792 = vpop.f32.mrb[0].mxu0
    %1793 = vmatprep.mubr.f32.mxu0 0.0
    %1794 = vmatmul.mubr.f32.gmra.mrb[0].mxu0 %v1420
    %v1795 = vpop.f32.mrb[0].mxu0
    %v1796 = vadd.f32 0.0, %v1795
    %v1797 = vpop.f32.mrb[0].mxu0
    %1798 = vmatprep.mubr.f32.mxu0 0.0
    %1799 = vmatmul.mubr.f32.gmra.mrb[0].mxu0 %v1423
    %v1800 = vpop.f32.mrb[0].mxu0
    %v1801 = vadd.f32 0.0, %v1800
    %v1802 = vpop.f32.mrb[0].mxu0
    %1803 = vmatprep.mubr.f32.mxu0 0.0
    %1804 = vmatmul.mubr.f32.gmra.mrb[0].mxu0 %v1426
    %v1805 = vpop.f32.mrb[0].mxu0
    %v1806 = vadd.f32 0.0, %v1805
    %v1807 = vpop.f32.mrb[0].mxu0
    %1808 = vmatprep.mubr.f32.mxu0 0.0
    %1809 = vmatmul.mubr.f32.gmra.mrb[0].mxu0 %v1429
    %v1810 = vpop.f32.mrb[0].mxu0
    %v1811 = vadd.f32 0.0, %v1810
    %v1812 = vpop.f32.mrb[0].mxu0
    %1813 = vmatprep.mubr.f32.mxu0 0.0
    %1814 = vmatmul.mubr.f32.gmra.mrb[0].mxu0 %v1432
    %v1815 = vpop.f32.mrb[0].mxu0
    %v1816 = vadd.f32 0.0, %v1815
    %v1817 = vpop.f32.mrb[0].mxu0
    %1818 = vdwg.mxu0
    %v1819 = vmax.f32 %v1501, 0.0
    %v1820 = vmax.f32 %v1506, 0.0
    %v1821 = vmax.f32 %v1511, 0.0
    %v1822 = vmax.f32 %v1516, 0.0
    %v1823 = vmax.f32 %v1521, 0.0
    %v1824 = vmax.f32 %v1526, 0.0
    %v1825 = vmax.f32 %v1531, 0.0
    %v1826 = vmax.f32 %v1536, 0.0
    %v1827 = vmax.f32 %v1541, 0.0
    %v1828 = vmax.f32 %v1546, 0.0
    %v1829 = vmax.f32 %v1551, 0.0
    %v1830 = vmax.f32 %v1556, 0.0
    %v1831 = vmax.f32 %v1561, 0.0
    %v1832 = vmax.f32 %v1566, 0.0
    %v1833 = vmax.f32 %v1571, 0.0
    %v1834 = vmax.f32 %v1576, 0.0
    %v1835 = vmax.f32 %v1581, 0.0
    %v1836 = vmax.f32 %v1586, 0.0
    %v1837 = vmax.f32 %v1591, 0.0
    %v1838 = vmax.f32 %v1596, 0.0
    %v1839 = vmax.f32 %v1601, 0.0
    %v1840 = vmax.f32 %v1606, 0.0
    %v1841 = vmax.f32 %v1611, 0.0
    %v1842 = vmax.f32 %v1616, 0.0
    %v1843 = vmax.f32 %v1621, 0.0
    %v1844 = vmax.f32 %v1626, 0.0
    %v1845 = vmax.f32 %v1631, 0.0
    %v1846 = vmax.f32 %v1636, 0.0
    %v1847 = vmax.f32 %v1641, 0.0
    %v1848 = vmax.f32 %v1646, 0.0
    %v1849 = vmax.f32 %v1651, 0.0
    %v1850 = vmax.f32 %v1656, 0.0
    %v1851 = vmax.f32 %v1661, 0.0
    %v1852 = vmax.f32 %v1666, 0.0
    %v1853 = vmax.f32 %v1671, 0.0
    %v1854 = vmax.f32 %v1676, 0.0
    %v1855 = vmax.f32 %v1681, 0.0
    %v1856 = vmax.f32 %v1686, 0.0
    %v1857 = vmax.f32 %v1691, 0.0
    %v1858 = vmax.f32 %v1696, 0.0
    %v1859 = vmax.f32 %v1701, 0.0
    %v1860 = vmax.f32 %v1706, 0.0
    %v1861 = vmax.f32 %v1711, 0.0
    %v1862 = vmax.f32 %v1716, 0.0
    %v1863 = vmax.f32 %v1721, 0.0
    %v1864 = vmax.f32 %v1726, 0.0
    %v1865 = vmax.f32 %v1731, 0.0
    %v1866 = vmax.f32 %v1736, 0.0
    %v1867 = vmax.f32 %v1741, 0.0
    %v1868 = vmax.f32 %v1746, 0.0
    %v1869 = vmax.f32 %v1751, 0.0
    %v1870 = vmax.f32 %v1756, 0.0
    %v1871 = vmax.f32 %v1761, 0.0
    %v1872 = vmax.f32 %v1766, 0.0
    %v1873 = vmax.f32 %v1771, 0.0
    %v1874 = vmax.f32 %v1776, 0.0
    %v1875 = vmax.f32 %v1781, 0.0
    %v1876 = vmax.f32 %v1786, 0.0
    %v1877 = vmax.f32 %v1791, 0.0
    %v1878 = vmax.f32 %v1796, 0.0
    %v1879 = vmax.f32 %v1801, 0.0
    %v1880 = vmax.f32 %v1806, 0.0
    %v1881 = vmax.f32 %v1811, 0.0
    %v1882 = vmax.f32 %v1816, 0.0
    %v1883 = vlaneseq
    %v1884 = vand.u32 %v1883, 127
    %v1885 = vadd.s32 %v1884, 128
    %v1886 = vadd.s32 %v1884, 256
    %v1887 = vadd.s32 %v1884, 384
    %v1888 = vlaneseq
    %v1889 = vshrl.u32 %v1888, 7
    %v1890 = vmul.u32 %v1889, 256
    %vm1891 = vcmp.ge.s32.totalorder %v1884, %v1890
    %vm1892 = vcmp.ge.s32.totalorder %v1885, %v1890
    %vm1893 = vcmp.ge.s32.totalorder %v1886, %v1890
    %vm1894 = vcmp.ge.s32.totalorder %v1887, %v1890
    %v1895 = vadd.s32 %v1889, 1
    %v1896 = vmul.u32 %v1895, 256
    %vm1897 = vcmp.lt.s32.totalorder %v1884, %v1896
    %vm1898 = vcmp.lt.s32.totalorder %v1885, %v1896
    %vm1899 = vcmp.lt.s32.totalorder %v1886, %v1896
    %vm1900 = vcmp.lt.s32.totalorder %v1887, %v1896
    %vm1901 = vmand %vm1891, %vm1897
    %vm1902 = vmand %vm1892, %vm1898
    %vm1903 = vmand %vm1893, %vm1899
    %vm1904 = vmand %vm1894, %vm1900
    %v1905 = vsel %vm1901, 0.00390625, 0.0
    %v1906 = vsel %vm1902, 0.00390625, 0.0
    %v1907 = vsel %vm1903, 0.00390625, 0.0
    %v1908 = vsel %vm1904, 0.00390625, 0.0
    %1909 = vmatprep.subr.mxu0 0.0
    %1910 = vmatpush1.msra.mxu0 %v1819
    %1911 = vmatprep.subr.mxu0 0.0
    %1912 = vmatpush1.msra.mxu0 %v1820
    %1913 = vmatprep.subr.mxu0 0.0
    %1914 = vmatpush1.msra.mxu0 %v1821
    %1915 = vmatprep.subr.mxu0 0.0
    %1916 = vmatpush1.msra.mxu0 %v1822
    %1917 = vmatprep.subr.mxu0 0.0
    %1918 = vmatpush1.msra.mxu0 %v1823
    %1919 = vmatprep.subr.mxu0 0.0
    %1920 = vmatpush1.msra.mxu0 %v1824
    %1921 = vmatprep.subr.mxu0 0.0
    %1922 = vmatpush1.msra.mxu0 %v1825
    %1923 = vmatprep.subr.mxu0 0.0
    %1924 = vmatpush1.msra.mxu0 %v1826
    %1925 = vmatprep.subr.mxu0 0.0
    %1926 = vmatpush1.msra.mxu0 %v1827
    %1927 = vmatprep.subr.mxu0 0.0
    %1928 = vmatpush1.msra.mxu0 %v1828
    %1929 = vmatprep.subr.mxu0 0.0
    %1930 = vmatpush1.msra.mxu0 %v1829
    %1931 = vmatprep.subr.mxu0 0.0
    %1932 = vmatpush1.msra.mxu0 %v1830
    %1933 = vmatprep.subr.mxu0 0.0
    %1934 = vmatpush1.msra.mxu0 %v1831
    %1935 = vmatprep.subr.mxu0 0.0
    %1936 = vmatpush1.msra.mxu0 %v1832
    %1937 = vmatprep.subr.mxu0 0.0
    %1938 = vmatpush1.msra.mxu0 %v1833
    %1939 = vmatprep.subr.mxu0 0.0
    %1940 = vmatpush1.msra.mxu0 %v1834
    %1941 = vmatprep.subr.mxu0 0.0
    %1942 = vmatpush1.msra.mxu0 %v1835
    %1943 = vmatprep.subr.mxu0 0.0
    %1944 = vmatpush1.msra.mxu0 %v1836
    %1945 = vmatprep.subr.mxu0 0.0
    %1946 = vmatpush1.msra.mxu0 %v1837
    %1947 = vmatprep.subr.mxu0 0.0
    %1948 = vmatpush1.msra.mxu0 %v1838
    %1949 = vmatprep.subr.mxu0 0.0
    %1950 = vmatpush1.msra.mxu0 %v1839
    %1951 = vmatprep.subr.mxu0 0.0
    %1952 = vmatpush1.msra.mxu0 %v1840
    %1953 = vmatprep.subr.mxu0 0.0
    %1954 = vmatpush1.msra.mxu0 %v1841
    %1955 = vmatprep.subr.mxu0 0.0
    %1956 = vmatpush1.msra.mxu0 %v1842
    %1957 = vmatprep.subr.mxu0 0.0
    %1958 = vmatpush1.msra.mxu0 %v1843
    %1959 = vmatprep.subr.mxu0 0.0
    %1960 = vmatpush1.msra.mxu0 %v1844
    %1961 = vmatprep.subr.mxu0 0.0
    %1962 = vmatpush1.msra.mxu0 %v1845
    %1963 = vmatprep.subr.mxu0 0.0
    %1964 = vmatpush1.msra.mxu0 %v1846
    %1965 = vmatprep.subr.mxu0 0.0
    %1966 = vmatpush1.msra.mxu0 %v1847
    %1967 = vmatprep.subr.mxu0 0.0
    %1968 = vmatpush1.msra.mxu0 %v1848
    %1969 = vmatprep.subr.mxu0 0.0
    %1970 = vmatpush1.msra.mxu0 %v1849
    %1971 = vmatprep.subr.mxu0 0.0
    %1972 = vmatpush1.msra.mxu0 %v1850
    %1973 = vmatprep.mubr.f32.mxu0 %v1906
    %1974 = vmatmul.mubr.f32.gmra.mrb[0].mxu0 %v1905
    %v1975 = vpop.f32.mrb[0].mxu0
    %v1976 = vadd.f32 0.0, %v1975
    %v1977 = vpop.f32.mrb[0].mxu0
    %1978 = vdwg.mxu0
    %1979 = vmatprep.subr.mxu0 0.0
    %1980 = vmatpush1.msra.mxu0 %v1851
    %1981 = vmatprep.subr.mxu0 0.0
    %1982 = vmatpush1.msra.mxu0 %v1852
    %1983 = vmatprep.subr.mxu0 0.0
    %1984 = vmatpush1.msra.mxu0 %v1853
    %1985 = vmatprep.subr.mxu0 0.0
    %1986 = vmatpush1.msra.mxu0 %v1854
    %1987 = vmatprep.subr.mxu0 0.0
    %1988 = vmatpush1.msra.mxu0 %v1855
    %1989 = vmatprep.subr.mxu0 0.0
    %1990 = vmatpush1.msra.mxu0 %v1856
    %1991 = vmatprep.subr.mxu0 0.0
    %1992 = vmatpush1.msra.mxu0 %v1857
    %1993 = vmatprep.subr.mxu0 0.0
    %1994 = vmatpush1.msra.mxu0 %v1858
    %1995 = vmatprep.subr.mxu0 0.0
    %1996 = vmatpush1.msra.mxu0 %v1859
    %1997 = vmatprep.subr.mxu0 0.0
    %1998 = vmatpush1.msra.mxu0 %v1860
    %1999 = vmatprep.subr.mxu0 0.0
    %2000 = vmatpush1.msra.mxu0 %v1861
    %2001 = vmatprep.subr.mxu0 0.0
    %2002 = vmatpush1.msra.mxu0 %v1862
    %2003 = vmatprep.subr.mxu0 0.0
    %2004 = vmatpush1.msra.mxu0 %v1863
    %2005 = vmatprep.subr.mxu0 0.0
    %2006 = vmatpush1.msra.mxu0 %v1864
    %2007 = vmatprep.subr.mxu0 0.0
    %2008 = vmatpush1.msra.mxu0 %v1865
    %2009 = vmatprep.subr.mxu0 0.0
    %2010 = vmatpush1.msra.mxu0 %v1866
    %2011 = vmatprep.subr.mxu0 0.0
    %2012 = vmatpush1.msra.mxu0 %v1867
    %2013 = vmatprep.subr.mxu0 0.0
    %2014 = vmatpush1.msra.mxu0 %v1868
    %2015 = vmatprep.subr.mxu0 0.0
    %2016 = vmatpush1.msra.mxu0 %v1869
    %2017 = vmatprep.subr.mxu0 0.0
    %2018 = vmatpush1.msra.mxu0 %v1870
    %2019 = vmatprep.subr.mxu0 0.0
    %2020 = vmatpush1.msra.mxu0 %v1871
    %2021 = vmatprep.subr.mxu0 0.0
    %2022 = vmatpush1.msra.mxu0 %v1872
    %2023 = vmatprep.subr.mxu0 0.0
    %2024 = vmatpush1.msra.mxu0 %v1873
    %2025 = vmatprep.subr.mxu0 0.0
    %2026 = vmatpush1.msra.mxu0 %v1874
    %2027 = vmatprep.subr.mxu0 0.0
    %2028 = vmatpush1.msra.mxu0 %v1875
    %2029 = vmatprep.subr.mxu0 0.0
    %2030 = vmatpush1.msra.mxu0 %v1876
    %2031 = vmatprep.subr.mxu0 0.0
    %2032 = vmatpush1.msra.mxu0 %v1877
    %2033 = vmatprep.subr.mxu0 0.0
    %2034 = vmatpush1.msra.mxu0 %v1878
    %2035 = vmatprep.subr.mxu0 0.0
    %2036 = vmatpush1.msra.mxu0 %v1879
    %2037 = vmatprep.subr.mxu0 0.0
    %2038 = vmatpush1.msra.mxu0 %v1880
    %2039 = vmatprep.subr.mxu0 0.0
    %2040 = vmatpush1.msra.mxu0 %v1881
    %2041 = vmatprep.subr.mxu0 0.0
    %2042 = vmatpush1.msra.mxu0 %v1882
    %2043 = vmatprep.mubr.f32.mxu0 %v1908
    %2044 = vmatmul.mubr.f32.gmra.mrb[0].mxu0 %v1907
    %v2045 = vpop.f32.mrb[0].mxu0
    %v2046 = vadd.f32 %v1976, %v2045
    %v2047 = vpop.f32.mrb[0].mxu0
    %2048 = vdwg.mxu0
    %v2049 = vld [vmem:[%s0 + $0x28] sm:$0xff]
    %v2050 = vld [vmem:[%s0 + $0x30] sm:$0xff]
    %v2051 = vld [vmem:[%s0 + $0x38] sm:$0xff]
    %v2052 = vld [vmem:[%s0 + $0x40] sm:$0xff]
    %v2053 = vld [vmem:[%s0 + $0x48] sm:$0x1]
    %v2054 = vlaneseq
    %v2055 = vshrl.u32 %v2054, 7
    %v2056 = vsub.s32 0, %v2055
    %v2057 = vrot.slane %v2053, %v2056
    %vm2058 = vcmask 261120
    %v2060 = vsel %vm2058, %v2046, 0
    %2062 = vmatprep.subr.mxu0 0.0
    %2063 = vmatpush1.msra.mxu0 %v2049
    %2064 = vmatprep.subr.mxu0 0.0
    %2065 = vmatpush1.msra.mxu0 %v2050
    %2066 = vmatprep.subr.mxu0 0.0
    %2067 = vmatpush1.msra.mxu0 %v2051
    %2068 = vmatprep.subr.mxu0 0.0
    %2069 = vmatpush1.msra.mxu0 %v2052
    %2070 = vmatprep.subr.mxu0 0.0
    %2071 = vmatpush1.msra.mxu0 0.0
    %2072 = vmatprep.subr.mxu0 0.0
    %2073 = vmatpush1.msra.mxu0 0.0
    %2074 = vmatprep.subr.mxu0 0.0
    %2075 = vmatpush1.msra.mxu0 0.0
    %2076 = vmatprep.subr.mxu0 0.0
    %2077 = vmatpush1.msra.mxu0 0.0
    %2078 = vmatprep.subr.mxu0 0.0
    %2079 = vmatpush1.msra.mxu0 0.0
    %2080 = vmatprep.subr.mxu0 0.0
    %2081 = vmatpush1.msra.mxu0 0.0
    %2082 = vmatprep.subr.mxu0 0.0
    %2083 = vmatpush1.msra.mxu0 0.0
    %2084 = vmatprep.subr.mxu0 0.0
    %2085 = vmatpush1.msra.mxu0 0.0
    %2086 = vmatprep.subr.mxu0 0.0
    %2087 = vmatpush1.msra.mxu0 0.0
    %2088 = vmatprep.subr.mxu0 0.0
    %2089 = vmatpush1.msra.mxu0 0.0
    %2090 = vmatprep.subr.mxu0 0.0
    %2091 = vmatpush1.msra.mxu0 0.0
    %2092 = vmatprep.subr.mxu0 0.0
    %2093 = vmatpush1.msra.mxu0 0.0
    %2094 = vmatprep.subr.mxu0 0.0
    %2095 = vmatpush1.msra.mxu0 0.0
    %2096 = vmatprep.subr.mxu0 0.0
    %2097 = vmatpush1.msra.mxu0 0.0
    %2098 = vmatprep.subr.mxu0 0.0
    %2099 = vmatpush1.msra.mxu0 0.0
    %2100 = vmatprep.subr.mxu0 0.0
    %2101 = vmatpush1.msra.mxu0 0.0
    %2102 = vmatprep.subr.mxu0 0.0
    %2103 = vmatpush1.msra.mxu0 0.0
    %2104 = vmatprep.subr.mxu0 0.0
    %2105 = vmatpush1.msra.mxu0 0.0
    %2106 = vmatprep.subr.mxu0 0.0
    %2107 = vmatpush1.msra.mxu0 0.0
    %2108 = vmatprep.subr.mxu0 0.0
    %2109 = vmatpush1.msra.mxu0 0.0
    %2110 = vmatprep.subr.mxu0 0.0
    %2111 = vmatpush1.msra.mxu0 0.0
    %2112 = vmatprep.subr.mxu0 0.0
    %2113 = vmatpush1.msra.mxu0 0.0
    %2114 = vmatprep.subr.mxu0 0.0
    %2115 = vmatpush1.msra.mxu0 0.0
    %2116 = vmatprep.subr.mxu0 0.0
    %2117 = vmatpush1.msra.mxu0 0.0
    %2118 = vmatprep.subr.mxu0 0.0
    %2119 = vmatpush1.msra.mxu0 0.0
    %2120 = vmatprep.subr.mxu0 0.0
    %2121 = vmatpush1.msra.mxu0 0.0
    %2122 = vmatprep.subr.mxu0 0.0
    %2123 = vmatpush1.msra.mxu0 0.0
    %2124 = vmatprep.subr.mxu0 0.0
    %2125 = vmatpush1.msra.mxu0 0.0
    %2126 = vmatprep.mubr.f32.mxu0 0.0
    %2127 = vmatmul.mubr.f32.gmra.mrb[0].mxu0 %v2060
    %v2128 = vpop.f32.mrb[0].mxu0
    %v2129 = vadd.f32 %v2057, %v2128
    %v2130 = vpop.f32.mrb[0].mxu0
    %2131 = vdwg.mxu0
    %vm2132 = vcmask 58368
    %2133 = vst.msk [vmem:[#allocation7] sm:$0x3] %vm2132, %v2129
    // Predicated region
    $region18: #{domain_independent_classifier.2} parent=1 // pred_check
      _
    $region19: #{domain_independent_classifier.2} parent=1 // pred_check_branch
      %2135 = sbr.rel (0) target = $region21
    $region20: #{domain_independent_classifier.2} parent=1 // pred_region
      %s2137 = ssub.s32 32, 32
      %2138 = vsyncadd [#allocation8], %s2137
      %s2140 = sshll.u32 [#allocation7], 4
      %s2141 = int_to_ptr.vmem [resolvable:$true] %s2140
      %2143 = dma.vmem_to_hbm [thread:$0]  %s2141, 32, %s5, [#allocation8]
    $region21: #{domain_independent_classifier.2} parent=1 // pred_fallthru
      _
    // Predicated region
    $region22: #{domain_independent_classifier.2} parent=1 // pred_check
      _
    $region23: #{domain_independent_classifier.2} parent=1 // pred_check_branch
      %2145 = sbr.rel (0) target = $region25
    $region24: #{domain_independent_classifier.2} parent=1 // pred_region
      %2146 = dma.done [#allocation8], 32
    $region25: #{domain_independent_classifier.2} parent=1 // pred_fallthru
      _
    %2147 = vsyncpa [#allocation8], 1

</llo_original>
